<compile_context>
chip_gen: v7x
topology: tpu7x:2x2x1
jax: 0.10.0
libtpu: 0.0.40
codegen_flags: <defaults>
</compile_context>

<pallas_src>
import jax
import jax.numpy as jnp
import numpy as np
from jax.experimental import pallas as pl
from jax.experimental.pallas import tpu as pltpu

# ----- small, module-consistent shapes -----
B, S, D = 2, 8, 32           # batch, seq, d_model
NHEAD = 4
HEAD_DIM = D // NHEAD
FF = 64                      # dim_feedforward
RMS_EPS = 1.1920929e-07      # torch.finfo(float32).eps (nn.RMSNorm eps=None default)


# ---------------------------------------------------------------------------
# Single fused kernel, one grid step per batch element (sequence).
# All weights are pre-packed / pre-transposed on the host (done once).
# ---------------------------------------------------------------------------
def _encoder_layer_kernel(x_ref, wqkv_ref, wo_ref, g1_ref, wug_ref, wdown_ref,
                          bdown_ref, g2_ref, o_ref):
    x = x_ref[...]            # (S, D)  one full sequence (grid axis = batch)
    wqkv = wqkv_ref[...]      # (3*NHEAD, D, HEAD_DIM)  per-head packed, Q pre-scaled
    wo = wo_ref[...]          # (D, D)
    wug = wug_ref[...]        # (D, 2*FF)  [up | gate]
    wdown = wdown_ref[...]    # (FF, D)
    g1 = g1_ref[...]          # (1, D)
    g2 = g2_ref[...]          # (1, D)
    b_down = bdown_ref[...]   # (1, D)

    # ---- QKV projection with heads batched on the LEADING axis ----
    # (no lane slicing: q/k/v/per-head extraction are leading-dim views; at real
    #  HEAD_DIM >= 128 these batched matmuls are fully lane/row dense.)
    xb = jnp.broadcast_to(x, (3 * NHEAD, S, D))                       # hoisted once
    qkv = jnp.einsum("nsd,ndh->nsh", xb, wqkv,
                     preferred_element_type=jnp.float32)              # (3H, S, HD)
    q = qkv[:NHEAD]                                                   # (H, S, HD)
    k = qkv[NHEAD:2 * NHEAD]
    v = qkv[2 * NHEAD:]

    # ---- head-batched attention (scale already folded into Wq) ----
    s = jnp.einsum("hqd,hkd->hqk", q, k,
                   preferred_element_type=jnp.float32)                # (H, S, S)
    s = s - jnp.max(s, axis=-1, keepdims=True)
    p = jnp.exp(s)
    p = p / jnp.sum(p, axis=-1, keepdims=True)                        # exact softmax
    ctx = jnp.einsum("hqk,hkd->hqd", p, v,
                     preferred_element_type=jnp.float32)              # (H, S, HD)

    # ---- recombine heads once, then a SINGLE output-projection matmul ----
    ctx_flat = jnp.concatenate([ctx[h] for h in range(NHEAD)], axis=-1)  # (S, D)
    sa = jnp.dot(ctx_flat, wo, preferred_element_type=jnp.float32)       # (S, D)

    # ---- residual add + RMSNorm 1 ----
    y1 = x + sa
    x1 = y1 * jax.lax.rsqrt(jnp.mean(y1 * y1, axis=-1, keepdims=True) + RMS_EPS) * g1

    # ---- SwiGLU FFN: packed lane-dense (D, 2*FF) = (32, 128) matmul ----
    ug = jnp.dot(x1, wug, preferred_element_type=jnp.float32)         # (S, 2*FF)
    up = ug[:, :FF]
    gate = ug[:, FF:]
    hidden = up * (gate * jax.nn.sigmoid(gate))                       # up * silu(gate)
    ff = jnp.dot(hidden, wdown, preferred_element_type=jnp.float32) + b_down

    # ---- residual add + RMSNorm 2 ----
    y2 = x1 + ff
    o_ref[...] = (y2 * jax.lax.rsqrt(jnp.mean(y2 * y2, axis=-1, keepdims=True)
                                     + RMS_EPS) * g2)


# ---------------------------------------------------------------------------
# Host-side weight packing: done ONCE, outside the forward path.
# ---------------------------------------------------------------------------
def pack_params(p):
    scale = 1.0 / float(np.sqrt(HEAD_DIM))

    def per_head(w, s=1.0):
        # torch Linear weight (out, in) -> (NHEAD, in, HEAD_DIM); head h = slab h
        return (w.T * s).reshape(D, NHEAD, HEAD_DIM).transpose(1, 0, 2)

    w_qkv = jnp.concatenate(
        [per_head(p["wq"], scale), per_head(p["wk"]), per_head(p["wv"])], axis=0)

    return {
        "w_qkv": w_qkv,                                                 # (3H, D, HD)
        "w_o": p["wo"].T,                                               # (D, D)
        "w_ug": jnp.concatenate([p["w_up"].T, p["w_gate"].T], axis=1),  # (D, 2*FF)
        "w_down": p["w_down"].T,                                        # (FF, D)
        "g1": p["g1"], "g2": p["g2"], "b_down": p["b_down"],            # (1, D) each
    }


@jax.jit
def transformer_encoder_layer(x, packed):
    return pl.pallas_call(
        _encoder_layer_kernel,
        out_shape=jax.ShapeDtypeStruct((B, S, D), jnp.float32),
        grid=(B,),
        in_specs=[
            pl.BlockSpec((None, S, D), lambda b: (b, 0, 0)),                 # x
            pl.BlockSpec((3 * NHEAD, D, HEAD_DIM), lambda b: (0, 0, 0)),     # w_qkv
            pl.BlockSpec((D, D), lambda b: (0, 0)),                          # w_o
            pl.BlockSpec((1, D), lambda b: (0, 0)),                          # g1
            pl.BlockSpec((D, 2 * FF), lambda b: (0, 0)),                     # w_ug
            pl.BlockSpec((FF, D), lambda b: (0, 0)),                         # w_down
            pl.BlockSpec((1, D), lambda b: (0, 0)),                          # b_down
            pl.BlockSpec((1, D), lambda b: (0, 0)),                          # g2
        ],
        out_specs=pl.BlockSpec((None, S, D), lambda b: (b, 0, 0)),
        compiler_params=pltpu.CompilerParams(
            # batch axis is independent -> shard across v7x's two TensorCores
            dimension_semantics=("parallel",),
            # explicit scoped-VMEM budget (re-derive for v7x's 64 MiB when scaling;
            # working set here is < 1 MiB)
            vmem_limit_bytes=48 * 1024 * 1024,
        ),
    )(x, packed["w_qkv"], packed["w_o"], packed["g1"], packed["w_ug"],
      packed["w_down"], packed["b_down"], packed["g2"])


# ---------------------------------------------------------------------------
# Pure-JAX reference for the correctness check.
# ---------------------------------------------------------------------------
def _reference(x, p):
    def rmsnorm(y, g):
        ms = jnp.mean(y * y, axis=-1, keepdims=True)
        return y * jax.lax.rsqrt(ms + RMS_EPS) * g[0]

    with jax.default_matmul_precision("highest"):
        q = x @ p["wq"].T
        k = x @ p["wk"].T
        v = x @ p["wv"].T
        qh = q.reshape(B, S, NHEAD, HEAD_DIM).transpose(0, 2, 1, 3)
        kh = k.reshape(B, S, NHEAD, HEAD_DIM).transpose(0, 2, 1, 3)
        vh = v.reshape(B, S, NHEAD, HEAD_DIM).transpose(0, 2, 1, 3)
        s = jnp.einsum("bhqd,bhkd->bhqk", qh, kh) / jnp.sqrt(jnp.float32(HEAD_DIM))
        a = jax.nn.softmax(s, axis=-1)
        ctx = jnp.einsum("bhqk,bhkd->bhqd", a, vh).transpose(0, 2, 1, 3).reshape(B, S, D)
        sa = ctx @ p["wo"].T
        x1 = rmsnorm(x + sa, p["g1"])
        up = x1 @ p["w_up"].T
        gate = x1 @ p["w_gate"].T
        ff = (up * jax.nn.silu(gate)) @ p["w_down"].T + p["b_down"][0]
        return rmsnorm(x1 + ff, p["g2"])


if __name__ == "__main__":
    key = jax.random.PRNGKey(0)
    keys = jax.random.split(key, 9)

    params = {
        # nn.MultiheadAttention(d_model, nhead, bias=False): Q/K/V/out proj (D, D)
        "wq": 0.05 * jax.random.normal(keys[0], (D, D), jnp.float32),
        "wk": 0.05 * jax.random.normal(keys[1], (D, D), jnp.float32),
        "wv": 0.05 * jax.random.normal(keys[2], (D, D), jnp.float32),
        "wo": 0.05 * jax.random.normal(keys[3], (D, D), jnp.float32),
        # RMSNorm weights
        "g1": jnp.ones((1, D), jnp.float32),
        "g2": jnp.ones((1, D), jnp.float32),
        # SwiGLUFFN: up/gate (FF, D) no bias, down (D, FF) with bias
        "w_up": 0.05 * jax.random.normal(keys[4], (FF, D), jnp.float32),
        "w_gate": 0.05 * jax.random.normal(keys[5], (FF, D), jnp.float32),
        "w_down": 0.05 * jax.random.normal(keys[6], (D, FF), jnp.float32),
        "b_down": 0.01 * jax.random.normal(keys[7], (1, D), jnp.float32),
    }

    x = jax.random.normal(keys[8], (B, S, D), jnp.float32)

    packed = pack_params(params)            # one-time packing, outside forward path
    out = transformer_encoder_layer(x, packed)
    out = jax.block_until_ready(out)

    ref = _reference(x, params)
    # Kernel uses exact softmax division; tolerance headroom only covers MXU vs XLA
    # accumulation-order / matmul-pass differences at f32.
    np.testing.assert_allclose(np.asarray(out), np.asarray(ref), rtol=2e-3, atol=2e-3)

    print("KERNEL_OK")
</pallas_src>

<mosaic_0001>
module attributes {stable_mosaic.version = 11 : i64} {
  func.func @_encoder_layer_kernel(%arg0: i32, %arg1: memref<1x8x32xf32, #tpu.memory_space<vmem>>, %arg2: memref<12x32x8xf32, #tpu.memory_space<vmem>>, %arg3: memref<32x32xf32, #tpu.memory_space<vmem>>, %arg4: memref<1x32xf32, #tpu.memory_space<vmem>>, %arg5: memref<32x128xf32, #tpu.memory_space<vmem>>, %arg6: memref<64x32xf32, #tpu.memory_space<vmem>>, %arg7: memref<1x32xf32, #tpu.memory_space<vmem>>, %arg8: memref<1x32xf32, #tpu.memory_space<vmem>>, %arg9: memref<1x8x32xf32, #tpu.memory_space<vmem>>) attributes {dimension_semantics = [#tpu.dimension_semantics<parallel>], iteration_bounds = array<i64: 2>, scalar_prefetch = 0 : i64, scratch_operands = 0 : i64, tpu.core_type = #tpu.core_type<tc>, window_params = [{transform_indices = @transform_0, window_bounds = array<i64: 1, 8, 32>}, {pipeline_mode = #tpu.pipeline_mode<synchronous>, transform_indices = @transform_1, window_bounds = array<i64: 12, 32, 8>}, {pipeline_mode = #tpu.pipeline_mode<synchronous>, transform_indices = @transform_2, window_bounds = array<i64: 32, 32>}, {pipeline_mode = #tpu.pipeline_mode<synchronous>, transform_indices = @transform_3, window_bounds = array<i64: 1, 32>}, {pipeline_mode = #tpu.pipeline_mode<synchronous>, transform_indices = @transform_4, window_bounds = array<i64: 32, 128>}, {pipeline_mode = #tpu.pipeline_mode<synchronous>, transform_indices = @transform_5, window_bounds = array<i64: 64, 32>}, {pipeline_mode = #tpu.pipeline_mode<synchronous>, transform_indices = @transform_6, window_bounds = array<i64: 1, 32>}, {pipeline_mode = #tpu.pipeline_mode<synchronous>, transform_indices = @transform_7, window_bounds = array<i64: 1, 32>}, {transform_indices = @transform_8, window_bounds = array<i64: 1, 8, 32>}]} {
    %c0 = arith.constant 0 : index
    %c0_0 = arith.constant 0 : index
    %c0_1 = arith.constant 0 : index
    %0 = vector.load %arg1[%c0, %c0_0, %c0_1] : memref<1x8x32xf32, #tpu.memory_space<vmem>>, vector<1x8x32xf32>
    %1 = vector.shape_cast %0 : vector<1x8x32xf32> to vector<8x32xf32>
    %c0_2 = arith.constant 0 : index
    %c0_3 = arith.constant 0 : index
    %c0_4 = arith.constant 0 : index
    %2 = vector.load %arg2[%c0_2, %c0_3, %c0_4] : memref<12x32x8xf32, #tpu.memory_space<vmem>>, vector<12x32x8xf32>
    %c0_5 = arith.constant 0 : index
    %c0_6 = arith.constant 0 : index
    %3 = vector.load %arg3[%c0_5, %c0_6] : memref<32x32xf32, #tpu.memory_space<vmem>>, vector<32x32xf32>
    %c0_7 = arith.constant 0 : index
    %c0_8 = arith.constant 0 : index
    %4 = vector.load %arg5[%c0_7, %c0_8] : memref<32x128xf32, #tpu.memory_space<vmem>>, vector<32x128xf32>
    %c0_9 = arith.constant 0 : index
    %c0_10 = arith.constant 0 : index
    %5 = vector.load %arg6[%c0_9, %c0_10] : memref<64x32xf32, #tpu.memory_space<vmem>>, vector<64x32xf32>
    %c0_11 = arith.constant 0 : index
    %c0_12 = arith.constant 0 : index
    %6 = vector.load %arg4[%c0_11, %c0_12] : memref<1x32xf32, #tpu.memory_space<vmem>>, vector<1x32xf32>
    %c0_13 = arith.constant 0 : index
    %c0_14 = arith.constant 0 : index
    %7 = vector.load %arg8[%c0_13, %c0_14] : memref<1x32xf32, #tpu.memory_space<vmem>>, vector<1x32xf32>
    %c0_15 = arith.constant 0 : index
    %c0_16 = arith.constant 0 : index
    %8 = vector.load %arg7[%c0_15, %c0_16] : memref<1x32xf32, #tpu.memory_space<vmem>>, vector<1x32xf32>
    %9 = vector.shape_cast %1 : vector<8x32xf32> to vector<1x8x32xf32>
    %10 = vector.broadcast %9 : vector<1x8x32xf32> to vector<12x8x32xf32>
    "tpu.trace_start"() <{level = 10 : i32, message = "nsd,ndh->nsh"}> : () -> ()
    %cst = arith.constant dense<0.000000e+00> : vector<12x8x8xf32>
    %11 = tpu.matmul %10, %2, %cst {dimension_numbers = #tpu.dot_dimension_numbers<[2], [1], [1], [2], [0, 0, 0, 1, 1, 2], [0], [0]>} : vector<12x8x32xf32>, vector<12x32x8xf32>, vector<12x8x8xf32> -> vector<12x8x8xf32>
    "tpu.trace_stop"() : () -> ()
    %12 = vector.extract_strided_slice %11 {offsets = [0, 0, 0], sizes = [4, 8, 8], strides = [1, 1, 1]} : vector<12x8x8xf32> to vector<4x8x8xf32>
    %13 = vector.extract_strided_slice %11 {offsets = [4, 0, 0], sizes = [4, 8, 8], strides = [1, 1, 1]} : vector<12x8x8xf32> to vector<4x8x8xf32>
    %14 = vector.extract_strided_slice %11 {offsets = [8, 0, 0], sizes = [4, 8, 8], strides = [1, 1, 1]} : vector<12x8x8xf32> to vector<4x8x8xf32>
    "tpu.trace_start"() <{level = 10 : i32, message = "hqd,hkd->hqk"}> : () -> ()
    %cst_17 = arith.constant dense<0.000000e+00> : vector<4x8x8xf32>
    %15 = tpu.matmul %12, %13, %cst_17 {dimension_numbers = #tpu.dot_dimension_numbers<[2], [2], [1], [1], [0, 0, 0, 1, 1, 1], [0], [0]>} : vector<4x8x8xf32>, vector<4x8x8xf32>, vector<4x8x8xf32> -> vector<4x8x8xf32>
    "tpu.trace_stop"() : () -> ()
    %cst_18 = arith.constant dense<0xFF800000> : vector<4x8xf32>
    %16 = vector.multi_reduction <maximumf>, %15, %cst_18 [2] : vector<4x8x8xf32> to vector<4x8xf32>
    %17 = vector.shape_cast %16 : vector<4x8xf32> to vector<4x8x1xf32>
    %18 = vector.broadcast %17 : vector<4x8x1xf32> to vector<4x8x8xf32>
    %19 = arith.subf %15, %18 : vector<4x8x8xf32>
    %20 = math.exp %19 : vector<4x8x8xf32>
    %cst_19 = arith.constant dense<0.000000e+00> : vector<4x8xf32>
    %21 = vector.multi_reduction <add>, %20, %cst_19 [2] : vector<4x8x8xf32> to vector<4x8xf32>
    %22 = vector.shape_cast %21 : vector<4x8xf32> to vector<4x8x1xf32>
    %23 = vector.broadcast %22 : vector<4x8x1xf32> to vector<4x8x8xf32>
    %24 = arith.divf %20, %23 : vector<4x8x8xf32>
    "tpu.trace_start"() <{level = 10 : i32, message = "hqk,hkd->hqd"}> : () -> ()
    %cst_20 = arith.constant dense<0.000000e+00> : vector<4x8x8xf32>
    %25 = tpu.matmul %24, %14, %cst_20 {dimension_numbers = #tpu.dot_dimension_numbers<[2], [1], [1], [2], [0, 0, 0, 1, 1, 2], [0], [0]>} : vector<4x8x8xf32>, vector<4x8x8xf32>, vector<4x8x8xf32> -> vector<4x8x8xf32>
    "tpu.trace_stop"() : () -> ()
    %26 = vector.extract_strided_slice %25 {offsets = [0, 0, 0], sizes = [1, 8, 8], strides = [1, 1, 1]} : vector<4x8x8xf32> to vector<1x8x8xf32>
    %27 = vector.shape_cast %26 : vector<1x8x8xf32> to vector<8x8xf32>
    %28 = vector.extract_strided_slice %25 {offsets = [1, 0, 0], sizes = [1, 8, 8], strides = [1, 1, 1]} : vector<4x8x8xf32> to vector<1x8x8xf32>
    %29 = vector.shape_cast %28 : vector<1x8x8xf32> to vector<8x8xf32>
    %30 = vector.extract_strided_slice %25 {offsets = [2, 0, 0], sizes = [1, 8, 8], strides = [1, 1, 1]} : vector<4x8x8xf32> to vector<1x8x8xf32>
    %31 = vector.shape_cast %30 : vector<1x8x8xf32> to vector<8x8xf32>
    %32 = vector.extract_strided_slice %25 {offsets = [3, 0, 0], sizes = [1, 8, 8], strides = [1, 1, 1]} : vector<4x8x8xf32> to vector<1x8x8xf32>
    %33 = vector.shape_cast %32 : vector<1x8x8xf32> to vector<8x8xf32>
    %34 = tpu.concatenate %27, %29, %31, %33 in 1 : vector<8x8xf32>, vector<8x8xf32>, vector<8x8xf32>, vector<8x8xf32> -> vector<8x32xf32>
    %cst_21 = arith.constant dense<0.000000e+00> : vector<8x32xf32>
    %35 = tpu.matmul %34, %3, %cst_21 {dimension_numbers = #tpu.dot_dimension_numbers<[1], [0], [0], [1], [0, 0, 1, 1], [], []>} : vector<8x32xf32>, vector<32x32xf32>, vector<8x32xf32> -> vector<8x32xf32>
    %36 = arith.addf %1, %35 : vector<8x32xf32>
    %37 = arith.mulf %36, %36 : vector<8x32xf32>
    %cst_22 = arith.constant dense<0.000000e+00> : vector<8xf32>
    %38 = vector.multi_reduction <add>, %37, %cst_22 [1] : vector<8x32xf32> to vector<8xf32>
    %39 = vector.shape_cast %38 : vector<8xf32> to vector<8x1xf32>
    %cst_23 = arith.constant 3.200000e+01 : f32
    %40 = vector.broadcast %cst_23 : f32 to vector<8x1xf32>
    %41 = arith.divf %39, %40 : vector<8x1xf32>
    %cst_24 = arith.constant 1.1920929E-7 : f32
    %42 = vector.broadcast %cst_24 : f32 to vector<8x1xf32>
    %43 = arith.addf %41, %42 : vector<8x1xf32>
    %44 = math.rsqrt %43 : vector<8x1xf32>
    %45 = vector.broadcast %44 : vector<8x1xf32> to vector<8x32xf32>
    %46 = arith.mulf %36, %45 : vector<8x32xf32>
    %47 = vector.broadcast %6 : vector<1x32xf32> to vector<8x32xf32>
    %48 = arith.mulf %46, %47 : vector<8x32xf32>
    %cst_25 = arith.constant dense<0.000000e+00> : vector<8x128xf32>
    %49 = tpu.matmul %48, %4, %cst_25 {dimension_numbers = #tpu.dot_dimension_numbers<[1], [0], [0], [1], [0, 0, 1, 1], [], []>} : vector<8x32xf32>, vector<32x128xf32>, vector<8x128xf32> -> vector<8x128xf32>
    %50 = vector.extract_strided_slice %49 {offsets = [0, 0], sizes = [8, 64], strides = [1, 1]} : vector<8x128xf32> to vector<8x64xf32>
    %51 = vector.extract_strided_slice %49 {offsets = [0, 64], sizes = [8, 64], strides = [1, 1]} : vector<8x128xf32> to vector<8x64xf32>
    %52 = arith.negf %51 : vector<8x64xf32>
    %53 = math.exp %52 : vector<8x64xf32>
    %cst_26 = arith.constant 1.000000e+00 : f32
    %54 = vector.broadcast %cst_26 : f32 to vector<8x64xf32>
    %55 = arith.addf %54, %53 : vector<8x64xf32>
    %56 = arith.divf %54, %55 : vector<8x64xf32>
    %57 = arith.mulf %51, %56 : vector<8x64xf32>
    %58 = arith.mulf %50, %57 : vector<8x64xf32>
    %cst_27 = arith.constant dense<0.000000e+00> : vector<8x32xf32>
    %59 = tpu.matmul %58, %5, %cst_27 {dimension_numbers = #tpu.dot_dimension_numbers<[1], [0], [0], [1], [0, 0, 1, 1], [], []>} : vector<8x64xf32>, vector<64x32xf32>, vector<8x32xf32> -> vector<8x32xf32>
    %60 = vector.broadcast %8 : vector<1x32xf32> to vector<8x32xf32>
    %61 = arith.addf %59, %60 : vector<8x32xf32>
    %62 = arith.addf %48, %61 : vector<8x32xf32>
    %63 = arith.mulf %62, %62 : vector<8x32xf32>
    %cst_28 = arith.constant dense<0.000000e+00> : vector<8xf32>
    %64 = vector.multi_reduction <add>, %63, %cst_28 [1] : vector<8x32xf32> to vector<8xf32>
    %65 = vector.shape_cast %64 : vector<8xf32> to vector<8x1xf32>
    %cst_29 = arith.constant 3.200000e+01 : f32
    %66 = vector.broadcast %cst_29 : f32 to vector<8x1xf32>
    %67 = arith.divf %65, %66 : vector<8x1xf32>
    %cst_30 = arith.constant 1.1920929E-7 : f32
    %68 = vector.broadcast %cst_30 : f32 to vector<8x1xf32>
    %69 = arith.addf %67, %68 : vector<8x1xf32>
    %70 = math.rsqrt %69 : vector<8x1xf32>
    %71 = vector.broadcast %70 : vector<8x1xf32> to vector<8x32xf32>
    %72 = arith.mulf %62, %71 : vector<8x32xf32>
    %73 = vector.broadcast %7 : vector<1x32xf32> to vector<8x32xf32>
    %74 = arith.mulf %72, %73 : vector<8x32xf32>
    %c0_31 = arith.constant 0 : index
    %c0_32 = arith.constant 0 : index
    %c0_33 = arith.constant 0 : index
    %75 = vector.load %arg9[%c0_31, %c0_32, %c0_33] : memref<1x8x32xf32, #tpu.memory_space<vmem>>, vector<1x8x32xf32>
    %76 = vector.shape_cast %75 : vector<1x8x32xf32> to vector<8x32xf32>
    %77 = vector.shape_cast %74 : vector<8x32xf32> to vector<1x8x32xf32>
    tpu.vector_store %arg9[%c0_31, %c0_32, %c0_33], %77 {strides = array<i32>} : memref<1x8x32xf32, #tpu.memory_space<vmem>>, vector<1x8x32xf32>,
    return
  }
  func.func @transform_0(%arg0: i32) -> (i32, i32, i32) {
    %c0_i32 = arith.constant 0 : i32
    %c0_i32_0 = arith.constant 0 : i32
    %c0_i32_1 = arith.constant 0 : i32
    return %arg0, %c0_i32, %c0_i32_0 : i32, i32, i32
  }
  func.func @transform_1(%arg0: i32) -> (i32, i32, i32) {
    %c0_i32 = arith.constant 0 : i32
    %c0_i32_0 = arith.constant 0 : i32
    %c0_i32_1 = arith.constant 0 : i32
    %c0_i32_2 = arith.constant 0 : i32
    return %c0_i32, %c0_i32_0, %c0_i32_1 : i32, i32, i32
  }
  func.func @transform_2(%arg0: i32) -> (i32, i32) {
    %c0_i32 = arith.constant 0 : i32
    %c0_i32_0 = arith.constant 0 : i32
    %c0_i32_1 = arith.constant 0 : i32
    return %c0_i32, %c0_i32_0 : i32, i32
  }
  func.func @transform_3(%arg0: i32) -> (i32, i32) {
    %c0_i32 = arith.constant 0 : i32
    %c0_i32_0 = arith.constant 0 : i32
    %c0_i32_1 = arith.constant 0 : i32
    return %c0_i32, %c0_i32_0 : i32, i32
  }
  func.func @transform_4(%arg0: i32) -> (i32, i32) {
    %c0_i32 = arith.constant 0 : i32
    %c0_i32_0 = arith.constant 0 : i32
    %c0_i32_1 = arith.constant 0 : i32
    return %c0_i32, %c0_i32_0 : i32, i32
  }
  func.func @transform_5(%arg0: i32) -> (i32, i32) {
    %c0_i32 = arith.constant 0 : i32
    %c0_i32_0 = arith.constant 0 : i32
    %c0_i32_1 = arith.constant 0 : i32
    return %c0_i32, %c0_i32_0 : i32, i32
  }
  func.func @transform_6(%arg0: i32) -> (i32, i32) {
    %c0_i32 = arith.constant 0 : i32
    %c0_i32_0 = arith.constant 0 : i32
    %c0_i32_1 = arith.constant 0 : i32
    return %c0_i32, %c0_i32_0 : i32, i32
  }
  func.func @transform_7(%arg0: i32) -> (i32, i32) {
    %c0_i32 = arith.constant 0 : i32
    %c0_i32_0 = arith.constant 0 : i32
    %c0_i32_1 = arith.constant 0 : i32
    return %c0_i32, %c0_i32_0 : i32, i32
  }
  func.func @transform_8(%arg0: i32) -> (i32, i32, i32) {
    %c0_i32 = arith.constant 0 : i32
    %c0_i32_0 = arith.constant 0 : i32
    %c0_i32_1 = arith.constant 0 : i32
    return %arg0, %c0_i32, %c0_i32_0 : i32, i32, i32
  }
}

</mosaic_0001>

<llo_original>
// kernel: transformer_encoder_layer.1
$region0: #{transformer_encoder_layer.1}
  #allocation0 [shape = 'u32[]', space=smem, size = 0x4, offset = 0x4, fixed_abs, tag = 'smem constant byte address 0x4 - core index']
  #allocation1 [shape = 'u32[144,128]{1,0:T(1,128)}', space=vmem, size = 0x12000, scoped, tag = 'internal scratch']
  %s0 = inlined_call_operand.vmem [shape: f32[2,8,32], index: 0, kind: input, shape index: {}]
  %s1 = inlined_call_operand.vmem [shape: f32[12,32,8], index: 1, kind: input, shape index: {}]
  %s2 = inlined_call_operand.vmem [shape: f32[32,32], index: 2, kind: input, shape index: {}]
  %s3 = inlined_call_operand.vmem [shape: f32[1,32], index: 3, kind: input, shape index: {}]
  %s4 = inlined_call_operand.vmem [shape: f32[32,128], index: 4, kind: input, shape index: {}]
  %s5 = inlined_call_operand.vmem [shape: f32[64,32], index: 5, kind: input, shape index: {}]
  %s6 = inlined_call_operand.vmem [shape: f32[1,32], index: 6, kind: input, shape index: {}]
  %s7 = inlined_call_operand.vmem [shape: f32[1,32], index: 7, kind: input, shape index: {}]
  %s8 = inlined_call_operand.hbm [shape: f32[2,8,32], index: 8, kind: output, shape index: {}]
  %s9 = sld [smem:[#allocation0]]
  $region65: #{transformer_encoder_layer.1} parent=0
    _
  %s11 = ssub.s32 1, %s9
  %s12 = scalar_select 0, %s11, %s9
  $region1: #{transformer_encoder_layer.1} parent=0
    #allocation2 [shape = 'u8[8192]{0}', space=vmem, size = 0x2000, scoped, tag = 'output window, operand 0']
    #allocation3 [shape = 's32[2]{0}', space=sflag, size = 0x8, scoped, tag = 'scoped memory for transformer_encoder_layer.1']
    %13 = vsyncpa [#allocation3], 0
    %s14 = scalar_lea.sflag [#allocation3], 1
    %15 = vsyncpa %s14, 0
    loop: start=0, step=1, limit=4
    $region2: #{transformer_encoder_layer.1} parent=1 // loop_pre_header
      _
    $region3: #{transformer_encoder_layer.1} parent=1 // loop_header
      %s17 = sphi 0, %s21
      %p18 = scmp.ge.s32.totalorder %s17, 4
      %s27 = sphi 0, %s29
      %s30 = sphi 0, %s27
      %s31 = sphi 0, %s30
      %s47 = sphi 0, %s31
      %s51 = sphi 0, %s51
      %s53 = sphi 0, %s51
      %s54 = sphi 0, %s53
      %s68 = sphi 0, %s54
      %s72 = sphi 0, %s72
      %s74 = sphi 0, %s72
      %s75 = sphi 0, %s74
      %s89 = sphi 0, %s75
      %s93 = sphi 0, %s93
      %s95 = sphi 0, %s93
      %s96 = sphi 0, %s95
      %s110 = sphi 0, %s96
      %s114 = sphi 0, %s114
      %s116 = sphi 0, %s114
      %s117 = sphi 0, %s116
      %s131 = sphi 0, %s117
      %s135 = sphi 0, %s135
      %s137 = sphi 0, %s135
      %s138 = sphi 0, %s137
      %s152 = sphi 0, %s138
      %s156 = sphi 0, %s156
      %s158 = sphi 0, %s156
      %s159 = sphi 0, %s158
      %s173 = sphi 0, %s159
      %s177 = sphi 0, %s177
      %s179 = sphi 0, %s177
      %s180 = sphi 0, %s179
      %s194 = sphi 0, %s180
      %s200 = sphi 0, %s202
      %s203 = sphi 0, %s200
      %s204 = sphi 0, %s203
      %s220 = sphi 0, %s204
    $region4: #{transformer_encoder_layer.1} parent=1 // loop_header_branch
      %20 = sbr.rel (%p18) target = $region8
    $region5: #{transformer_encoder_layer.1} parent=1 // loop_body
      %s22 = ssub.s32 %s17, 1
      %s23 = ssub.s32 %s17, 2
      %s24 = sadd.s32 %s17, 1
      %s25 = ssub.s32 %s17, %s24
      %p26 = scmp.eq.s32.totalorder %s25, 0
      %s28 = sadd.s32 %s27, 1
      %s29 = scalar_select %p26, %s27, %s28
      %p32 = pneg %p26
      %p33 = scmp.eq.s32.totalorder %s17, 1
      %p34 = por %p32, %p33
      %p35 = scmp.ne.s32.totalorder %s27, %s30
      %p36 = scmp.eq.s32.totalorder %s17, 0
      %p37 = por %p35, %p36
      %p38 = scmp.ne.s32.totalorder %s27, %s30
      %p39 = scmp.eq.s32.totalorder %s22, 1
      %p40 = por %p38, %p39
      %p41 = scmp.ne.s32.totalorder %s30, %s31
      %p42 = scmp.eq.s32.totalorder %s22, 0
      %p43 = por %p41, %p42
      %p44 = scmp.ne.s32.totalorder %s30, %s31
      %p45 = scmp.eq.s32.totalorder %s23, 1
      %p46 = por %p44, %p45
      %p48 = scmp.ne.s32.totalorder %s31, %s47
      %p49 = scmp.eq.s32.totalorder %s23, 0
      %p50 = por %p48, %p49
      %s52 = sadd.s32 %s51, 1
      %p55 = scmp.eq.s32.totalorder %s17, 1
      %p56 = scmp.ne.s32.totalorder %s51, %s53
      %p57 = scmp.eq.s32.totalorder %s17, 0
      %p58 = por %p56, %p57
      %p59 = scmp.ne.s32.totalorder %s51, %s53
      %p60 = scmp.eq.s32.totalorder %s22, 1
      %p61 = por %p59, %p60
      %p62 = scmp.ne.s32.totalorder %s53, %s54
      %p63 = scmp.eq.s32.totalorder %s22, 0
      %p64 = por %p62, %p63
      %p65 = scmp.ne.s32.totalorder %s53, %s54
      %p66 = scmp.eq.s32.totalorder %s23, 1
      %p67 = por %p65, %p66
      %p69 = scmp.ne.s32.totalorder %s54, %s68
      %p70 = scmp.eq.s32.totalorder %s23, 0
      %p71 = por %p69, %p70
      %s73 = sadd.s32 %s72, 1
      %p76 = scmp.eq.s32.totalorder %s17, 1
      %p77 = scmp.ne.s32.totalorder %s72, %s74
      %p78 = scmp.eq.s32.totalorder %s17, 0
      %p79 = por %p77, %p78
      %p80 = scmp.ne.s32.totalorder %s72, %s74
      %p81 = scmp.eq.s32.totalorder %s22, 1
      %p82 = por %p80, %p81
      %p83 = scmp.ne.s32.totalorder %s74, %s75
      %p84 = scmp.eq.s32.totalorder %s22, 0
      %p85 = por %p83, %p84
      %p86 = scmp.ne.s32.totalorder %s74, %s75
      %p87 = scmp.eq.s32.totalorder %s23, 1
      %p88 = por %p86, %p87
      %p90 = scmp.ne.s32.totalorder %s75, %s89
      %p91 = scmp.eq.s32.totalorder %s23, 0
      %p92 = por %p90, %p91
      %s94 = sadd.s32 %s93, 1
      %p97 = scmp.eq.s32.totalorder %s17, 1
      %p98 = scmp.ne.s32.totalorder %s93, %s95
      %p99 = scmp.eq.s32.totalorder %s17, 0
      %p100 = por %p98, %p99
      %p101 = scmp.ne.s32.totalorder %s93, %s95
      %p102 = scmp.eq.s32.totalorder %s22, 1
      %p103 = por %p101, %p102
      %p104 = scmp.ne.s32.totalorder %s95, %s96
      %p105 = scmp.eq.s32.totalorder %s22, 0
      %p106 = por %p104, %p105
      %p107 = scmp.ne.s32.totalorder %s95, %s96
      %p108 = scmp.eq.s32.totalorder %s23, 1
      %p109 = por %p107, %p108
      %p111 = scmp.ne.s32.totalorder %s96, %s110
      %p112 = scmp.eq.s32.totalorder %s23, 0
      %p113 = por %p111, %p112
      %s115 = sadd.s32 %s114, 1
      %p118 = scmp.eq.s32.totalorder %s17, 1
      %p119 = scmp.ne.s32.totalorder %s114, %s116
      %p120 = scmp.eq.s32.totalorder %s17, 0
      %p121 = por %p119, %p120
      %p122 = scmp.ne.s32.totalorder %s114, %s116
      %p123 = scmp.eq.s32.totalorder %s22, 1
      %p124 = por %p122, %p123
      %p125 = scmp.ne.s32.totalorder %s116, %s117
      %p126 = scmp.eq.s32.totalorder %s22, 0
      %p127 = por %p125, %p126
      %p128 = scmp.ne.s32.totalorder %s116, %s117
      %p129 = scmp.eq.s32.totalorder %s23, 1
      %p130 = por %p128, %p129
      %p132 = scmp.ne.s32.totalorder %s117, %s131
      %p133 = scmp.eq.s32.totalorder %s23, 0
      %p134 = por %p132, %p133
      %s136 = sadd.s32 %s135, 1
      %p139 = scmp.eq.s32.totalorder %s17, 1
      %p140 = scmp.ne.s32.totalorder %s135, %s137
      %p141 = scmp.eq.s32.totalorder %s17, 0
      %p142 = por %p140, %p141
      %p143 = scmp.ne.s32.totalorder %s135, %s137
      %p144 = scmp.eq.s32.totalorder %s22, 1
      %p145 = por %p143, %p144
      %p146 = scmp.ne.s32.totalorder %s137, %s138
      %p147 = scmp.eq.s32.totalorder %s22, 0
      %p148 = por %p146, %p147
      %p149 = scmp.ne.s32.totalorder %s137, %s138
      %p150 = scmp.eq.s32.totalorder %s23, 1
      %p151 = por %p149, %p150
      %p153 = scmp.ne.s32.totalorder %s138, %s152
      %p154 = scmp.eq.s32.totalorder %s23, 0
      %p155 = por %p153, %p154
      %s157 = sadd.s32 %s156, 1
      %p160 = scmp.eq.s32.totalorder %s17, 1
      %p161 = scmp.ne.s32.totalorder %s156, %s158
      %p162 = scmp.eq.s32.totalorder %s17, 0
      %p163 = por %p161, %p162
      %p164 = scmp.ne.s32.totalorder %s156, %s158
      %p165 = scmp.eq.s32.totalorder %s22, 1
      %p166 = por %p164, %p165
      %p167 = scmp.ne.s32.totalorder %s158, %s159
      %p168 = scmp.eq.s32.totalorder %s22, 0
      %p169 = por %p167, %p168
      %p170 = scmp.ne.s32.totalorder %s158, %s159
      %p171 = scmp.eq.s32.totalorder %s23, 1
      %p172 = por %p170, %p171
      %p174 = scmp.ne.s32.totalorder %s159, %s173
      %p175 = scmp.eq.s32.totalorder %s23, 0
      %p176 = por %p174, %p175
      %s178 = sadd.s32 %s177, 1
      %p181 = scmp.eq.s32.totalorder %s17, 1
      %p182 = scmp.ne.s32.totalorder %s177, %s179
      %p183 = scmp.eq.s32.totalorder %s17, 0
      %p184 = por %p182, %p183
      %p185 = scmp.ne.s32.totalorder %s177, %s179
      %p186 = scmp.eq.s32.totalorder %s22, 1
      %p187 = por %p185, %p186
      %p188 = scmp.ne.s32.totalorder %s179, %s180
      %p189 = scmp.eq.s32.totalorder %s22, 0
      %p190 = por %p188, %p189
      %p191 = scmp.ne.s32.totalorder %s179, %s180
      %p192 = scmp.eq.s32.totalorder %s23, 1
      %p193 = por %p191, %p192
      %p195 = scmp.ne.s32.totalorder %s180, %s194
      %p196 = scmp.eq.s32.totalorder %s23, 0
      %p197 = por %p195, %p196
      %s198 = ssub.s32 %s17, %s24
      %p199 = scmp.eq.s32.totalorder %s198, 0
      %s201 = sadd.s32 %s200, 1
      %s202 = scalar_select %p199, %s200, %s201
      %p205 = pneg %p199
      %p206 = scmp.eq.s32.totalorder %s17, 1
      %p207 = por %p205, %p206
      %p208 = scmp.ne.s32.totalorder %s200, %s203
      %p209 = scmp.eq.s32.totalorder %s17, 0
      %p210 = por %p208, %p209
      %p211 = scmp.ne.s32.totalorder %s200, %s203
      %p212 = scmp.eq.s32.totalorder %s22, 1
      %p213 = por %p211, %p212
      %p214 = scmp.ne.s32.totalorder %s203, %s204
      %p215 = scmp.eq.s32.totalorder %s22, 0
      %p216 = por %p214, %p215
      %p217 = scmp.ne.s32.totalorder %s203, %s204
      %p218 = scmp.eq.s32.totalorder %s23, 1
      %p219 = por %p217, %p218
      %p221 = scmp.ne.s32.totalorder %s204, %s220
      %p222 = scmp.eq.s32.totalorder %s23, 0
      %p223 = por %p221, %p222
      %p224 = scmp.le.s32.totalorder 1, %s17
      %p225 = scmp.lt.s32.totalorder %s17, 3
      %p226 = pnand %p224, %p225
      %p227 = pneg %p226
      // Predicated region
      $region9: #{transformer_encoder_layer.1} parent=5 // pred_check
        _
      $region10: #{transformer_encoder_layer.1} parent=5 // pred_check_branch
        %229 = sbr.rel (%p226) target = $region12
      $region11: #{transformer_encoder_layer.1} parent=5 // pred_region
        %s230 = ssub.s32 %s17, 1
        // Predicated region
        $region13: #{transformer_encoder_layer.1} parent=11 // pred_check
          %p231 = pneg %p64
        $region14: #{transformer_encoder_layer.1} parent=11 // pred_check_branch
          %233 = sbr.rel (%p231) target = $region16
        $region15: #{transformer_encoder_layer.1} parent=11 // pred_region
          _
        $region16: #{transformer_encoder_layer.1} parent=11 // pred_fallthru
          _
        // Predicated region
        $region17: #{transformer_encoder_layer.1} parent=11 // pred_check
          %p234 = pneg %p85
        $region18: #{transformer_encoder_layer.1} parent=11 // pred_check_branch
          %236 = sbr.rel (%p234) target = $region20
        $region19: #{transformer_encoder_layer.1} parent=11 // pred_region
          _
        $region20: #{transformer_encoder_layer.1} parent=11 // pred_fallthru
          _
        // Predicated region
        $region21: #{transformer_encoder_layer.1} parent=11 // pred_check
          %p237 = pneg %p106
        $region22: #{transformer_encoder_layer.1} parent=11 // pred_check_branch
          %239 = sbr.rel (%p237) target = $region24
        $region23: #{transformer_encoder_layer.1} parent=11 // pred_region
          _
        $region24: #{transformer_encoder_layer.1} parent=11 // pred_fallthru
          _
        // Predicated region
        $region25: #{transformer_encoder_layer.1} parent=11 // pred_check
          %p240 = pneg %p127
        $region26: #{transformer_encoder_layer.1} parent=11 // pred_check_branch
          %242 = sbr.rel (%p240) target = $region28
        $region27: #{transformer_encoder_layer.1} parent=11 // pred_region
          _
        $region28: #{transformer_encoder_layer.1} parent=11 // pred_fallthru
          _
        // Predicated region
        $region29: #{transformer_encoder_layer.1} parent=11 // pred_check
          %p243 = pneg %p148
        $region30: #{transformer_encoder_layer.1} parent=11 // pred_check_branch
          %245 = sbr.rel (%p243) target = $region32
        $region31: #{transformer_encoder_layer.1} parent=11 // pred_region
          _
        $region32: #{transformer_encoder_layer.1} parent=11 // pred_fallthru
          _
        // Predicated region
        $region33: #{transformer_encoder_layer.1} parent=11 // pred_check
          %p246 = pneg %p169
        $region34: #{transformer_encoder_layer.1} parent=11 // pred_check_branch
          %248 = sbr.rel (%p246) target = $region36
        $region35: #{transformer_encoder_layer.1} parent=11 // pred_region
          _
        $region36: #{transformer_encoder_layer.1} parent=11 // pred_fallthru
          _
        // Predicated region
        $region37: #{transformer_encoder_layer.1} parent=11 // pred_check
          %p249 = pneg %p190
        $region38: #{transformer_encoder_layer.1} parent=11 // pred_check_branch
          %251 = sbr.rel (%p249) target = $region40
        $region39: #{transformer_encoder_layer.1} parent=11 // pred_region
          _
        $region40: #{transformer_encoder_layer.1} parent=11 // pred_fallthru
          _
      $region12: #{transformer_encoder_layer.1} parent=5 // pred_fallthru
        _
      %p252 = scmp.lt.s32.totalorder %s17, 2
      // Predicated region
      $region41: #{transformer_encoder_layer.1} parent=5 // pred_check
        %p253 = pneg %p252
      $region42: #{transformer_encoder_layer.1} parent=5 // pred_check_branch
        %255 = sbr.rel (%p253) target = $region44
      $region43: #{transformer_encoder_layer.1} parent=5 // pred_region
        // Predicated region
        $region45: #{transformer_encoder_layer.1} parent=43 // pred_check
          %p256 = pneg %p37
        $region46: #{transformer_encoder_layer.1} parent=43 // pred_check_branch
          %258 = sbr.rel (%p256) target = $region48
        $region47: #{transformer_encoder_layer.1} parent=43 // pred_region
          %p259 = scmp.lt.s32.totalorder %s17, 1
          %s260 = scalar_select %p259, %s17, 1
          %s261 = smul.addr %s260, 8
          %s262 = scalar_lea.vmem %s0, %s261
        $region48: #{transformer_encoder_layer.1} parent=43 // pred_fallthru
          _
      $region44: #{transformer_encoder_layer.1} parent=5 // pred_fallthru
        _
      %p263 = scmp.le.s32.totalorder 1, %s17
      %p264 = scmp.lt.s32.totalorder %s17, 3
      %p265 = pnand %p263, %p264
      %p266 = pneg %p265
      // Predicated region
      $region49: #{transformer_encoder_layer.1} parent=5 // pred_check
        _
      $region50: #{transformer_encoder_layer.1} parent=5 // pred_check_branch
        %268 = sbr.rel (%p265) target = $region52
      $region51: #{transformer_encoder_layer.1} parent=5 // pred_region
        %s269 = ssub.s32 %s17, 1
        %p270 = scmp.lt.s32.totalorder %s22, 1
        %s271 = scalar_select %p270, %s22, 1
        %s272 = smul.addr %s271, 8
        %s273 = scalar_lea.vmem %s0, %s272
        %p274 = pneg %p43
        %p275 = pneg %p40
        %p276 = pneg %p64
        %p277 = pneg %p61
        %p278 = pneg %p85
        %p279 = pneg %p82
        %p280 = pneg %p106
        %p281 = pneg %p103
        %p282 = pneg %p127
        %p283 = pneg %p124
        %p284 = pneg %p148
        %p285 = pneg %p145
        %p286 = pneg %p169
        %p287 = pneg %p166
        %p288 = pneg %p190
        %p289 = pneg %p187
        %p290 = pneg %p216
        %p291 = pneg %p213
        %s292 = sand.u32 %s203, 1
        %s293 = scalar_lea.sflag [#allocation3], %s292
        %s294 = sand.u32 %s203, 1
        %s295 = smul.addr %s294, 8
        %s296 = scalar_lea.vmem [#allocation2], %s295
        %p297 = scmp.lt.s32.totalorder %s22, 1
        %s298 = scalar_select %p297, %s22, 1
        %s299 = smul.addr %s298, 8
        %s300 = scalar_lea.vmem %s0, %s299
        %v301 = vld [vmem:[%s300] sm:$0xff]
        %v302 = vld [vmem:[%s1] sm:$0xff]
        %v303 = vld [vmem:[%s1 + $0x8] sm:$0xff]
        %v304 = vld [vmem:[%s1 + $0x10] sm:$0xff]
        %v305 = vld [vmem:[%s1 + $0x18] sm:$0xff]
        %v306 = vld [vmem:[%s1 + $0x20] sm:$0xff]
        %v307 = vld [vmem:[%s1 + $0x28] sm:$0xff]
        %v308 = vld [vmem:[%s1 + $0x30] sm:$0xff]
        %v309 = vld [vmem:[%s1 + $0x38] sm:$0xff]
        %v310 = vld [vmem:[%s1 + $0x40] sm:$0xff]
        %v311 = vld [vmem:[%s1 + $0x48] sm:$0xff]
        %v312 = vld [vmem:[%s1 + $0x50] sm:$0xff]
        %v313 = vld [vmem:[%s1 + $0x58] sm:$0xff]
        %v314 = vld [vmem:[%s1 + $0x60] sm:$0xff]
        %v315 = vld [vmem:[%s1 + $0x68] sm:$0xff]
        %v316 = vld [vmem:[%s1 + $0x70] sm:$0xff]
        %v317 = vld [vmem:[%s1 + $0x78] sm:$0xff]
        %v318 = vld [vmem:[%s1 + $0x80] sm:$0xff]
        %v319 = vld [vmem:[%s1 + $0x88] sm:$0xff]
        %v320 = vld [vmem:[%s1 + $0x90] sm:$0xff]
        %v321 = vld [vmem:[%s1 + $0x98] sm:$0xff]
        %v322 = vld [vmem:[%s1 + $0xa0] sm:$0xff]
        %v323 = vld [vmem:[%s1 + $0xa8] sm:$0xff]
        %v324 = vld [vmem:[%s1 + $0xb0] sm:$0xff]
        %v325 = vld [vmem:[%s1 + $0xb8] sm:$0xff]
        %v326 = vld [vmem:[%s1 + $0xc0] sm:$0xff]
        %v327 = vld [vmem:[%s1 + $0xc8] sm:$0xff]
        %v328 = vld [vmem:[%s1 + $0xd0] sm:$0xff]
        %v329 = vld [vmem:[%s1 + $0xd8] sm:$0xff]
        %v330 = vld [vmem:[%s1 + $0xe0] sm:$0xff]
        %v331 = vld [vmem:[%s1 + $0xe8] sm:$0xff]
        %v332 = vld [vmem:[%s1 + $0xf0] sm:$0xff]
        %v333 = vld [vmem:[%s1 + $0xf8] sm:$0xff]
        %v334 = vld [vmem:[%s1 + $0x100] sm:$0xff]
        %v335 = vld [vmem:[%s1 + $0x108] sm:$0xff]
        %v336 = vld [vmem:[%s1 + $0x110] sm:$0xff]
        %v337 = vld [vmem:[%s1 + $0x118] sm:$0xff]
        %v338 = vld [vmem:[%s1 + $0x120] sm:$0xff]
        %v339 = vld [vmem:[%s1 + $0x128] sm:$0xff]
        %v340 = vld [vmem:[%s1 + $0x130] sm:$0xff]
        %v341 = vld [vmem:[%s1 + $0x138] sm:$0xff]
        %v342 = vld [vmem:[%s1 + $0x140] sm:$0xff]
        %v343 = vld [vmem:[%s1 + $0x148] sm:$0xff]
        %v344 = vld [vmem:[%s1 + $0x150] sm:$0xff]
        %v345 = vld [vmem:[%s1 + $0x158] sm:$0xff]
        %v346 = vld [vmem:[%s1 + $0x160] sm:$0xff]
        %v347 = vld [vmem:[%s1 + $0x168] sm:$0xff]
        %v348 = vld [vmem:[%s1 + $0x170] sm:$0xff]
        %v349 = vld [vmem:[%s1 + $0x178] sm:$0xff]
        %v350 = vld [vmem:[%s2] sm:$0xff]
        %v351 = vld [vmem:[%s2 + $0x8] sm:$0xff]
        %v352 = vld [vmem:[%s2 + $0x10] sm:$0xff]
        %v353 = vld [vmem:[%s2 + $0x18] sm:$0xff]
        %v354 = vld [vmem:[%s4] sm:$0xff]
        %v355 = vld [vmem:[%s4 + $0x8] sm:$0xff]
        %v356 = vld [vmem:[%s4 + $0x10] sm:$0xff]
        %v357 = vld [vmem:[%s4 + $0x18] sm:$0xff]
        %v358 = vld [vmem:[%s5] sm:$0xff]
        %v359 = vld [vmem:[%s5 + $0x8] sm:$0xff]
        %v360 = vld [vmem:[%s5 + $0x10] sm:$0xff]
        %v361 = vld [vmem:[%s5 + $0x18] sm:$0xff]
        %v362 = vld [vmem:[%s5 + $0x20] sm:$0xff]
        %v363 = vld [vmem:[%s5 + $0x28] sm:$0xff]
        %v364 = vld [vmem:[%s5 + $0x30] sm:$0xff]
        %v365 = vld [vmem:[%s5 + $0x38] sm:$0xff]
        %v366 = vld [vmem:[%s3] sm:$0x1]
        %v367 = vld [vmem:[%s7] sm:$0x1]
        %v368 = vld [vmem:[%s6] sm:$0x1]
        %vm369 = vcmask 261120
        %v371 = vsel %vm369, %v301, 0
        %373 = vmatprep.subr.mxu0 0.0
        %374 = vmatpush1.msra.mxu0 %v302
        %375 = vmatprep.subr.mxu0 0.0
        %376 = vmatpush1.msra.mxu0 %v303
        %377 = vmatprep.subr.mxu0 0.0
        %378 = vmatpush1.msra.mxu0 %v304
        %379 = vmatprep.subr.mxu0 0.0
        %380 = vmatpush1.msra.mxu0 %v305
        %381 = vmatprep.subr.mxu0 0.0
        %382 = vmatpush1.msra.mxu0 0.0
        %383 = vmatprep.subr.mxu0 0.0
        %384 = vmatpush1.msra.mxu0 0.0
        %385 = vmatprep.subr.mxu0 0.0
        %386 = vmatpush1.msra.mxu0 0.0
        %387 = vmatprep.subr.mxu0 0.0
        %388 = vmatpush1.msra.mxu0 0.0
        %389 = vmatprep.subr.mxu0 0.0
        %390 = vmatpush1.msra.mxu0 0.0
        %391 = vmatprep.subr.mxu0 0.0
        %392 = vmatpush1.msra.mxu0 0.0
        %393 = vmatprep.subr.mxu0 0.0
        %394 = vmatpush1.msra.mxu0 0.0
        %395 = vmatprep.subr.mxu0 0.0
        %396 = vmatpush1.msra.mxu0 0.0
        %397 = vmatprep.subr.mxu0 0.0
        %398 = vmatpush1.msra.mxu0 0.0
        %399 = vmatprep.subr.mxu0 0.0
        %400 = vmatpush1.msra.mxu0 0.0
        %401 = vmatprep.subr.mxu0 0.0
        %402 = vmatpush1.msra.mxu0 0.0
        %403 = vmatprep.subr.mxu0 0.0
        %404 = vmatpush1.msra.mxu0 0.0
        %405 = vmatprep.subr.mxu0 0.0
        %406 = vmatpush1.msra.mxu0 0.0
        %407 = vmatprep.subr.mxu0 0.0
        %408 = vmatpush1.msra.mxu0 0.0
        %409 = vmatprep.subr.mxu0 0.0
        %410 = vmatpush1.msra.mxu0 0.0
        %411 = vmatprep.subr.mxu0 0.0
        %412 = vmatpush1.msra.mxu0 0.0
        %413 = vmatprep.subr.mxu0 0.0
        %414 = vmatpush1.msra.mxu0 0.0
        %415 = vmatprep.subr.mxu0 0.0
        %416 = vmatpush1.msra.mxu0 0.0
        %417 = vmatprep.subr.mxu0 0.0
        %418 = vmatpush1.msra.mxu0 0.0
        %419 = vmatprep.subr.mxu0 0.0
        %420 = vmatpush1.msra.mxu0 0.0
        %421 = vmatprep.subr.mxu0 0.0
        %422 = vmatpush1.msra.mxu0 0.0
        %423 = vmatprep.subr.mxu0 0.0
        %424 = vmatpush1.msra.mxu0 0.0
        %425 = vmatprep.subr.mxu0 0.0
        %426 = vmatpush1.msra.mxu0 0.0
        %427 = vmatprep.subr.mxu0 0.0
        %428 = vmatpush1.msra.mxu0 0.0
        %429 = vmatprep.subr.mxu0 0.0
        %430 = vmatpush1.msra.mxu0 0.0
        %431 = vmatprep.subr.mxu0 0.0
        %432 = vmatpush1.msra.mxu0 0.0
        %433 = vmatprep.subr.mxu0 0.0
        %434 = vmatpush1.msra.mxu0 0.0
        %435 = vmatprep.subr.mxu0 0.0
        %436 = vmatpush1.msra.mxu0 0.0
        %437 = vmatprep.mubr.f32.mxu0 0.0
        %438 = vmatmul.mubr.f32.gmra.mrb[0].mxu0 %v371
        %v439 = vpop.f32.mrb[0].mxu0
        %v440 = vadd.f32 0.0, %v439
        %v441 = vpop.f32.mrb[0].mxu0
        %442 = vdwg.mxu0
        %443 = vmatprep.subr.mxu0 0.0
        %444 = vmatpush1.msra.mxu0 %v306
        %445 = vmatprep.subr.mxu0 0.0
        %446 = vmatpush1.msra.mxu0 %v307
        %447 = vmatprep.subr.mxu0 0.0
        %448 = vmatpush1.msra.mxu0 %v308
        %449 = vmatprep.subr.mxu0 0.0
        %450 = vmatpush1.msra.mxu0 %v309
        %451 = vmatprep.subr.mxu0 0.0
        %452 = vmatpush1.msra.mxu0 0.0
        %453 = vmatprep.subr.mxu0 0.0
        %454 = vmatpush1.msra.mxu0 0.0
        %455 = vmatprep.subr.mxu0 0.0
        %456 = vmatpush1.msra.mxu0 0.0
        %457 = vmatprep.subr.mxu0 0.0
        %458 = vmatpush1.msra.mxu0 0.0
        %459 = vmatprep.subr.mxu0 0.0
        %460 = vmatpush1.msra.mxu0 0.0
        %461 = vmatprep.subr.mxu0 0.0
        %462 = vmatpush1.msra.mxu0 0.0
        %463 = vmatprep.subr.mxu0 0.0
        %464 = vmatpush1.msra.mxu0 0.0
        %465 = vmatprep.subr.mxu0 0.0
        %466 = vmatpush1.msra.mxu0 0.0
        %467 = vmatprep.subr.mxu0 0.0
        %468 = vmatpush1.msra.mxu0 0.0
        %469 = vmatprep.subr.mxu0 0.0
        %470 = vmatpush1.msra.mxu0 0.0
        %471 = vmatprep.subr.mxu0 0.0
        %472 = vmatpush1.msra.mxu0 0.0
        %473 = vmatprep.subr.mxu0 0.0
        %474 = vmatpush1.msra.mxu0 0.0
        %475 = vmatprep.subr.mxu0 0.0
        %476 = vmatpush1.msra.mxu0 0.0
        %477 = vmatprep.subr.mxu0 0.0
        %478 = vmatpush1.msra.mxu0 0.0
        %479 = vmatprep.subr.mxu0 0.0
        %480 = vmatpush1.msra.mxu0 0.0
        %481 = vmatprep.subr.mxu0 0.0
        %482 = vmatpush1.msra.mxu0 0.0
        %483 = vmatprep.subr.mxu0 0.0
        %484 = vmatpush1.msra.mxu0 0.0
        %485 = vmatprep.subr.mxu0 0.0
        %486 = vmatpush1.msra.mxu0 0.0
        %487 = vmatprep.subr.mxu0 0.0
        %488 = vmatpush1.msra.mxu0 0.0
        %489 = vmatprep.subr.mxu0 0.0
        %490 = vmatpush1.msra.mxu0 0.0
        %491 = vmatprep.subr.mxu0 0.0
        %492 = vmatpush1.msra.mxu0 0.0
        %493 = vmatprep.subr.mxu0 0.0
        %494 = vmatpush1.msra.mxu0 0.0
        %495 = vmatprep.subr.mxu0 0.0
        %496 = vmatpush1.msra.mxu0 0.0
        %497 = vmatprep.subr.mxu0 0.0
        %498 = vmatpush1.msra.mxu0 0.0
        %499 = vmatprep.subr.mxu0 0.0
        %500 = vmatpush1.msra.mxu0 0.0
        %501 = vmatprep.subr.mxu0 0.0
        %502 = vmatpush1.msra.mxu0 0.0
        %503 = vmatprep.subr.mxu0 0.0
        %504 = vmatpush1.msra.mxu0 0.0
        %505 = vmatprep.subr.mxu0 0.0
        %506 = vmatpush1.msra.mxu0 0.0
        %507 = vmatprep.mubr.f32.mxu0 0.0
        %508 = vmatmul.mubr.f32.gmra.mrb[0].mxu0 %v371
        %v509 = vpop.f32.mrb[0].mxu0
        %v510 = vadd.f32 0.0, %v509
        %v511 = vpop.f32.mrb[0].mxu0
        %512 = vdwg.mxu0
        %513 = vmatprep.subr.mxu0 0.0
        %514 = vmatpush1.msra.mxu0 %v310
        %515 = vmatprep.subr.mxu0 0.0
        %516 = vmatpush1.msra.mxu0 %v311
        %517 = vmatprep.subr.mxu0 0.0
        %518 = vmatpush1.msra.mxu0 %v312
        %519 = vmatprep.subr.mxu0 0.0
        %520 = vmatpush1.msra.mxu0 %v313
        %521 = vmatprep.subr.mxu0 0.0
        %522 = vmatpush1.msra.mxu0 0.0
        %523 = vmatprep.subr.mxu0 0.0
        %524 = vmatpush1.msra.mxu0 0.0
        %525 = vmatprep.subr.mxu0 0.0
        %526 = vmatpush1.msra.mxu0 0.0
        %527 = vmatprep.subr.mxu0 0.0
        %528 = vmatpush1.msra.mxu0 0.0
        %529 = vmatprep.subr.mxu0 0.0
        %530 = vmatpush1.msra.mxu0 0.0
        %531 = vmatprep.subr.mxu0 0.0
        %532 = vmatpush1.msra.mxu0 0.0
        %533 = vmatprep.subr.mxu0 0.0
        %534 = vmatpush1.msra.mxu0 0.0
        %535 = vmatprep.subr.mxu0 0.0
        %536 = vmatpush1.msra.mxu0 0.0
        %537 = vmatprep.subr.mxu0 0.0
        %538 = vmatpush1.msra.mxu0 0.0
        %539 = vmatprep.subr.mxu0 0.0
        %540 = vmatpush1.msra.mxu0 0.0
        %541 = vmatprep.subr.mxu0 0.0
        %542 = vmatpush1.msra.mxu0 0.0
        %543 = vmatprep.subr.mxu0 0.0
        %544 = vmatpush1.msra.mxu0 0.0
        %545 = vmatprep.subr.mxu0 0.0
        %546 = vmatpush1.msra.mxu0 0.0
        %547 = vmatprep.subr.mxu0 0.0
        %548 = vmatpush1.msra.mxu0 0.0
        %549 = vmatprep.subr.mxu0 0.0
        %550 = vmatpush1.msra.mxu0 0.0
        %551 = vmatprep.subr.mxu0 0.0
        %552 = vmatpush1.msra.mxu0 0.0
        %553 = vmatprep.subr.mxu0 0.0
        %554 = vmatpush1.msra.mxu0 0.0
        %555 = vmatprep.subr.mxu0 0.0
        %556 = vmatpush1.msra.mxu0 0.0
        %557 = vmatprep.subr.mxu0 0.0
        %558 = vmatpush1.msra.mxu0 0.0
        %559 = vmatprep.subr.mxu0 0.0
        %560 = vmatpush1.msra.mxu0 0.0
        %561 = vmatprep.subr.mxu0 0.0
        %562 = vmatpush1.msra.mxu0 0.0
        %563 = vmatprep.subr.mxu0 0.0
        %564 = vmatpush1.msra.mxu0 0.0
        %565 = vmatprep.subr.mxu0 0.0
        %566 = vmatpush1.msra.mxu0 0.0
        %567 = vmatprep.subr.mxu0 0.0
        %568 = vmatpush1.msra.mxu0 0.0
        %569 = vmatprep.subr.mxu0 0.0
        %570 = vmatpush1.msra.mxu0 0.0
        %571 = vmatprep.subr.mxu0 0.0
        %572 = vmatpush1.msra.mxu0 0.0
        %573 = vmatprep.subr.mxu0 0.0
        %574 = vmatpush1.msra.mxu0 0.0
        %575 = vmatprep.subr.mxu0 0.0
        %576 = vmatpush1.msra.mxu0 0.0
        %577 = vmatprep.mubr.f32.mxu0 0.0
        %578 = vmatmul.mubr.f32.gmra.mrb[0].mxu0 %v371
        %v579 = vpop.f32.mrb[0].mxu0
        %v580 = vadd.f32 0.0, %v579
        %v581 = vpop.f32.mrb[0].mxu0
        %582 = vdwg.mxu0
        %583 = vmatprep.subr.mxu0 0.0
        %584 = vmatpush1.msra.mxu0 %v314
        %585 = vmatprep.subr.mxu0 0.0
        %586 = vmatpush1.msra.mxu0 %v315
        %587 = vmatprep.subr.mxu0 0.0
        %588 = vmatpush1.msra.mxu0 %v316
        %589 = vmatprep.subr.mxu0 0.0
        %590 = vmatpush1.msra.mxu0 %v317
        %591 = vmatprep.subr.mxu0 0.0
        %592 = vmatpush1.msra.mxu0 0.0
        %593 = vmatprep.subr.mxu0 0.0
        %594 = vmatpush1.msra.mxu0 0.0
        %595 = vmatprep.subr.mxu0 0.0
        %596 = vmatpush1.msra.mxu0 0.0
        %597 = vmatprep.subr.mxu0 0.0
        %598 = vmatpush1.msra.mxu0 0.0
        %599 = vmatprep.subr.mxu0 0.0
        %600 = vmatpush1.msra.mxu0 0.0
        %601 = vmatprep.subr.mxu0 0.0
        %602 = vmatpush1.msra.mxu0 0.0
        %603 = vmatprep.subr.mxu0 0.0
        %604 = vmatpush1.msra.mxu0 0.0
        %605 = vmatprep.subr.mxu0 0.0
        %606 = vmatpush1.msra.mxu0 0.0
        %607 = vmatprep.subr.mxu0 0.0
        %608 = vmatpush1.msra.mxu0 0.0
        %609 = vmatprep.subr.mxu0 0.0
        %610 = vmatpush1.msra.mxu0 0.0
        %611 = vmatprep.subr.mxu0 0.0
        %612 = vmatpush1.msra.mxu0 0.0
        %613 = vmatprep.subr.mxu0 0.0
        %614 = vmatpush1.msra.mxu0 0.0
        %615 = vmatprep.subr.mxu0 0.0
        %616 = vmatpush1.msra.mxu0 0.0
        %617 = vmatprep.subr.mxu0 0.0
        %618 = vmatpush1.msra.mxu0 0.0
        %619 = vmatprep.subr.mxu0 0.0
        %620 = vmatpush1.msra.mxu0 0.0
        %621 = vmatprep.subr.mxu0 0.0
        %622 = vmatpush1.msra.mxu0 0.0
        %623 = vmatprep.subr.mxu0 0.0
        %624 = vmatpush1.msra.mxu0 0.0
        %625 = vmatprep.subr.mxu0 0.0
        %626 = vmatpush1.msra.mxu0 0.0
        %627 = vmatprep.subr.mxu0 0.0
        %628 = vmatpush1.msra.mxu0 0.0
        %629 = vmatprep.subr.mxu0 0.0
        %630 = vmatpush1.msra.mxu0 0.0
        %631 = vmatprep.subr.mxu0 0.0
        %632 = vmatpush1.msra.mxu0 0.0
        %633 = vmatprep.subr.mxu0 0.0
        %634 = vmatpush1.msra.mxu0 0.0
        %635 = vmatprep.subr.mxu0 0.0
        %636 = vmatpush1.msra.mxu0 0.0
        %637 = vmatprep.subr.mxu0 0.0
        %638 = vmatpush1.msra.mxu0 0.0
        %639 = vmatprep.subr.mxu0 0.0
        %640 = vmatpush1.msra.mxu0 0.0
        %641 = vmatprep.subr.mxu0 0.0
        %642 = vmatpush1.msra.mxu0 0.0
        %643 = vmatprep.subr.mxu0 0.0
        %644 = vmatpush1.msra.mxu0 0.0
        %645 = vmatprep.subr.mxu0 0.0
        %646 = vmatpush1.msra.mxu0 0.0
        %647 = vmatprep.mubr.f32.mxu0 0.0
        %648 = vmatmul.mubr.f32.gmra.mrb[0].mxu0 %v371
        %v649 = vpop.f32.mrb[0].mxu0
        %v650 = vadd.f32 0.0, %v649
        %v651 = vpop.f32.mrb[0].mxu0
        %652 = vdwg.mxu0
        %653 = vmatprep.subr.mxu0 0.0
        %654 = vmatpush1.msra.mxu0 %v318
        %655 = vmatprep.subr.mxu0 0.0
        %656 = vmatpush1.msra.mxu0 %v319
        %657 = vmatprep.subr.mxu0 0.0
        %658 = vmatpush1.msra.mxu0 %v320
        %659 = vmatprep.subr.mxu0 0.0
        %660 = vmatpush1.msra.mxu0 %v321
        %661 = vmatprep.subr.mxu0 0.0
        %662 = vmatpush1.msra.mxu0 0.0
        %663 = vmatprep.subr.mxu0 0.0
        %664 = vmatpush1.msra.mxu0 0.0
        %665 = vmatprep.subr.mxu0 0.0
        %666 = vmatpush1.msra.mxu0 0.0
        %667 = vmatprep.subr.mxu0 0.0
        %668 = vmatpush1.msra.mxu0 0.0
        %669 = vmatprep.subr.mxu0 0.0
        %670 = vmatpush1.msra.mxu0 0.0
        %671 = vmatprep.subr.mxu0 0.0
        %672 = vmatpush1.msra.mxu0 0.0
        %673 = vmatprep.subr.mxu0 0.0
        %674 = vmatpush1.msra.mxu0 0.0
        %675 = vmatprep.subr.mxu0 0.0
        %676 = vmatpush1.msra.mxu0 0.0
        %677 = vmatprep.subr.mxu0 0.0
        %678 = vmatpush1.msra.mxu0 0.0
        %679 = vmatprep.subr.mxu0 0.0
        %680 = vmatpush1.msra.mxu0 0.0
        %681 = vmatprep.subr.mxu0 0.0
        %682 = vmatpush1.msra.mxu0 0.0
        %683 = vmatprep.subr.mxu0 0.0
        %684 = vmatpush1.msra.mxu0 0.0
        %685 = vmatprep.subr.mxu0 0.0
        %686 = vmatpush1.msra.mxu0 0.0
        %687 = vmatprep.subr.mxu0 0.0
        %688 = vmatpush1.msra.mxu0 0.0
        %689 = vmatprep.subr.mxu0 0.0
        %690 = vmatpush1.msra.mxu0 0.0
        %691 = vmatprep.subr.mxu0 0.0
        %692 = vmatpush1.msra.mxu0 0.0
        %693 = vmatprep.subr.mxu0 0.0
        %694 = vmatpush1.msra.mxu0 0.0
        %695 = vmatprep.subr.mxu0 0.0
        %696 = vmatpush1.msra.mxu0 0.0
        %697 = vmatprep.subr.mxu0 0.0
        %698 = vmatpush1.msra.mxu0 0.0
        %699 = vmatprep.subr.mxu0 0.0
        %700 = vmatpush1.msra.mxu0 0.0
        %701 = vmatprep.subr.mxu0 0.0
        %702 = vmatpush1.msra.mxu0 0.0
        %703 = vmatprep.subr.mxu0 0.0
        %704 = vmatpush1.msra.mxu0 0.0
        %705 = vmatprep.subr.mxu0 0.0
        %706 = vmatpush1.msra.mxu0 0.0
        %707 = vmatprep.subr.mxu0 0.0
        %708 = vmatpush1.msra.mxu0 0.0
        %709 = vmatprep.subr.mxu0 0.0
        %710 = vmatpush1.msra.mxu0 0.0
        %711 = vmatprep.subr.mxu0 0.0
        %712 = vmatpush1.msra.mxu0 0.0
        %713 = vmatprep.subr.mxu0 0.0
        %714 = vmatpush1.msra.mxu0 0.0
        %715 = vmatprep.subr.mxu0 0.0
        %716 = vmatpush1.msra.mxu0 0.0
        %717 = vmatprep.mubr.f32.mxu0 0.0
        %718 = vmatmul.mubr.f32.gmra.mrb[0].mxu0 %v371
        %v719 = vpop.f32.mrb[0].mxu0
        %v720 = vadd.f32 0.0, %v719
        %v721 = vpop.f32.mrb[0].mxu0
        %722 = vdwg.mxu0
        %723 = vmatprep.subr.mxu0 0.0
        %724 = vmatpush1.msra.mxu0 %v322
        %725 = vmatprep.subr.mxu0 0.0
        %726 = vmatpush1.msra.mxu0 %v323
        %727 = vmatprep.subr.mxu0 0.0
        %728 = vmatpush1.msra.mxu0 %v324
        %729 = vmatprep.subr.mxu0 0.0
        %730 = vmatpush1.msra.mxu0 %v325
        %731 = vmatprep.subr.mxu0 0.0
        %732 = vmatpush1.msra.mxu0 0.0
        %733 = vmatprep.subr.mxu0 0.0
        %734 = vmatpush1.msra.mxu0 0.0
        %735 = vmatprep.subr.mxu0 0.0
        %736 = vmatpush1.msra.mxu0 0.0
        %737 = vmatprep.subr.mxu0 0.0
        %738 = vmatpush1.msra.mxu0 0.0
        %739 = vmatprep.subr.mxu0 0.0
        %740 = vmatpush1.msra.mxu0 0.0
        %741 = vmatprep.subr.mxu0 0.0
        %742 = vmatpush1.msra.mxu0 0.0
        %743 = vmatprep.subr.mxu0 0.0
        %744 = vmatpush1.msra.mxu0 0.0
        %745 = vmatprep.subr.mxu0 0.0
        %746 = vmatpush1.msra.mxu0 0.0
        %747 = vmatprep.subr.mxu0 0.0
        %748 = vmatpush1.msra.mxu0 0.0
        %749 = vmatprep.subr.mxu0 0.0
        %750 = vmatpush1.msra.mxu0 0.0
        %751 = vmatprep.subr.mxu0 0.0
        %752 = vmatpush1.msra.mxu0 0.0
        %753 = vmatprep.subr.mxu0 0.0
        %754 = vmatpush1.msra.mxu0 0.0
        %755 = vmatprep.subr.mxu0 0.0
        %756 = vmatpush1.msra.mxu0 0.0
        %757 = vmatprep.subr.mxu0 0.0
        %758 = vmatpush1.msra.mxu0 0.0
        %759 = vmatprep.subr.mxu0 0.0
        %760 = vmatpush1.msra.mxu0 0.0
        %761 = vmatprep.subr.mxu0 0.0
        %762 = vmatpush1.msra.mxu0 0.0
        %763 = vmatprep.subr.mxu0 0.0
        %764 = vmatpush1.msra.mxu0 0.0
        %765 = vmatprep.subr.mxu0 0.0
        %766 = vmatpush1.msra.mxu0 0.0
        %767 = vmatprep.subr.mxu0 0.0
        %768 = vmatpush1.msra.mxu0 0.0
        %769 = vmatprep.subr.mxu0 0.0
        %770 = vmatpush1.msra.mxu0 0.0
        %771 = vmatprep.subr.mxu0 0.0
        %772 = vmatpush1.msra.mxu0 0.0
        %773 = vmatprep.subr.mxu0 0.0
        %774 = vmatpush1.msra.mxu0 0.0
        %775 = vmatprep.subr.mxu0 0.0
        %776 = vmatpush1.msra.mxu0 0.0
        %777 = vmatprep.subr.mxu0 0.0
        %778 = vmatpush1.msra.mxu0 0.0
        %779 = vmatprep.subr.mxu0 0.0
        %780 = vmatpush1.msra.mxu0 0.0
        %781 = vmatprep.subr.mxu0 0.0
        %782 = vmatpush1.msra.mxu0 0.0
        %783 = vmatprep.subr.mxu0 0.0
        %784 = vmatpush1.msra.mxu0 0.0
        %785 = vmatprep.subr.mxu0 0.0
        %786 = vmatpush1.msra.mxu0 0.0
        %787 = vmatprep.mubr.f32.mxu0 0.0
        %788 = vmatmul.mubr.f32.gmra.mrb[0].mxu0 %v371
        %v789 = vpop.f32.mrb[0].mxu0
        %v790 = vadd.f32 0.0, %v789
        %v791 = vpop.f32.mrb[0].mxu0
        %792 = vdwg.mxu0
        %793 = vmatprep.subr.mxu0 0.0
        %794 = vmatpush1.msra.mxu0 %v326
        %795 = vmatprep.subr.mxu0 0.0
        %796 = vmatpush1.msra.mxu0 %v327
        %797 = vmatprep.subr.mxu0 0.0
        %798 = vmatpush1.msra.mxu0 %v328
        %799 = vmatprep.subr.mxu0 0.0
        %800 = vmatpush1.msra.mxu0 %v329
        %801 = vmatprep.subr.mxu0 0.0
        %802 = vmatpush1.msra.mxu0 0.0
        %803 = vmatprep.subr.mxu0 0.0
        %804 = vmatpush1.msra.mxu0 0.0
        %805 = vmatprep.subr.mxu0 0.0
        %806 = vmatpush1.msra.mxu0 0.0
        %807 = vmatprep.subr.mxu0 0.0
        %808 = vmatpush1.msra.mxu0 0.0
        %809 = vmatprep.subr.mxu0 0.0
        %810 = vmatpush1.msra.mxu0 0.0
        %811 = vmatprep.subr.mxu0 0.0
        %812 = vmatpush1.msra.mxu0 0.0
        %813 = vmatprep.subr.mxu0 0.0
        %814 = vmatpush1.msra.mxu0 0.0
        %815 = vmatprep.subr.mxu0 0.0
        %816 = vmatpush1.msra.mxu0 0.0
        %817 = vmatprep.subr.mxu0 0.0
        %818 = vmatpush1.msra.mxu0 0.0
        %819 = vmatprep.subr.mxu0 0.0
        %820 = vmatpush1.msra.mxu0 0.0
        %821 = vmatprep.subr.mxu0 0.0
        %822 = vmatpush1.msra.mxu0 0.0
        %823 = vmatprep.subr.mxu0 0.0
        %824 = vmatpush1.msra.mxu0 0.0
        %825 = vmatprep.subr.mxu0 0.0
        %826 = vmatpush1.msra.mxu0 0.0
        %827 = vmatprep.subr.mxu0 0.0
        %828 = vmatpush1.msra.mxu0 0.0
        %829 = vmatprep.subr.mxu0 0.0
        %830 = vmatpush1.msra.mxu0 0.0
        %831 = vmatprep.subr.mxu0 0.0
        %832 = vmatpush1.msra.mxu0 0.0
        %833 = vmatprep.subr.mxu0 0.0
        %834 = vmatpush1.msra.mxu0 0.0
        %835 = vmatprep.subr.mxu0 0.0
        %836 = vmatpush1.msra.mxu0 0.0
        %837 = vmatprep.subr.mxu0 0.0
        %838 = vmatpush1.msra.mxu0 0.0
        %839 = vmatprep.subr.mxu0 0.0
        %840 = vmatpush1.msra.mxu0 0.0
        %841 = vmatprep.subr.mxu0 0.0
        %842 = vmatpush1.msra.mxu0 0.0
        %843 = vmatprep.subr.mxu0 0.0
        %844 = vmatpush1.msra.mxu0 0.0
        %845 = vmatprep.subr.mxu0 0.0
        %846 = vmatpush1.msra.mxu0 0.0
        %847 = vmatprep.subr.mxu0 0.0
        %848 = vmatpush1.msra.mxu0 0.0
        %849 = vmatprep.subr.mxu0 0.0
        %850 = vmatpush1.msra.mxu0 0.0
        %851 = vmatprep.subr.mxu0 0.0
        %852 = vmatpush1.msra.mxu0 0.0
        %853 = vmatprep.subr.mxu0 0.0
        %854 = vmatpush1.msra.mxu0 0.0
        %855 = vmatprep.subr.mxu0 0.0
        %856 = vmatpush1.msra.mxu0 0.0
        %857 = vmatprep.mubr.f32.mxu0 0.0
        %858 = vmatmul.mubr.f32.gmra.mrb[0].mxu0 %v371
        %v859 = vpop.f32.mrb[0].mxu0
        %v860 = vadd.f32 0.0, %v859
        %v861 = vpop.f32.mrb[0].mxu0
        %862 = vdwg.mxu0
        %863 = vmatprep.subr.mxu0 0.0
        %864 = vmatpush1.msra.mxu0 %v330
        %865 = vmatprep.subr.mxu0 0.0
        %866 = vmatpush1.msra.mxu0 %v331
        %867 = vmatprep.subr.mxu0 0.0
        %868 = vmatpush1.msra.mxu0 %v332
        %869 = vmatprep.subr.mxu0 0.0
        %870 = vmatpush1.msra.mxu0 %v333
        %871 = vmatprep.subr.mxu0 0.0
        %872 = vmatpush1.msra.mxu0 0.0
        %873 = vmatprep.subr.mxu0 0.0
        %874 = vmatpush1.msra.mxu0 0.0
        %875 = vmatprep.subr.mxu0 0.0
        %876 = vmatpush1.msra.mxu0 0.0
        %877 = vmatprep.subr.mxu0 0.0
        %878 = vmatpush1.msra.mxu0 0.0
        %879 = vmatprep.subr.mxu0 0.0
        %880 = vmatpush1.msra.mxu0 0.0
        %881 = vmatprep.subr.mxu0 0.0
        %882 = vmatpush1.msra.mxu0 0.0
        %883 = vmatprep.subr.mxu0 0.0
        %884 = vmatpush1.msra.mxu0 0.0
        %885 = vmatprep.subr.mxu0 0.0
        %886 = vmatpush1.msra.mxu0 0.0
        %887 = vmatprep.subr.mxu0 0.0
        %888 = vmatpush1.msra.mxu0 0.0
        %889 = vmatprep.subr.mxu0 0.0
        %890 = vmatpush1.msra.mxu0 0.0
        %891 = vmatprep.subr.mxu0 0.0
        %892 = vmatpush1.msra.mxu0 0.0
        %893 = vmatprep.subr.mxu0 0.0
        %894 = vmatpush1.msra.mxu0 0.0
        %895 = vmatprep.subr.mxu0 0.0
        %896 = vmatpush1.msra.mxu0 0.0
        %897 = vmatprep.subr.mxu0 0.0
        %898 = vmatpush1.msra.mxu0 0.0
        %899 = vmatprep.subr.mxu0 0.0
        %900 = vmatpush1.msra.mxu0 0.0
        %901 = vmatprep.subr.mxu0 0.0
        %902 = vmatpush1.msra.mxu0 0.0
        %903 = vmatprep.subr.mxu0 0.0
        %904 = vmatpush1.msra.mxu0 0.0
        %905 = vmatprep.subr.mxu0 0.0
        %906 = vmatpush1.msra.mxu0 0.0
        %907 = vmatprep.subr.mxu0 0.0
        %908 = vmatpush1.msra.mxu0 0.0
        %909 = vmatprep.subr.mxu0 0.0
        %910 = vmatpush1.msra.mxu0 0.0
        %911 = vmatprep.subr.mxu0 0.0
        %912 = vmatpush1.msra.mxu0 0.0
        %913 = vmatprep.subr.mxu0 0.0
        %914 = vmatpush1.msra.mxu0 0.0
        %915 = vmatprep.subr.mxu0 0.0
        %916 = vmatpush1.msra.mxu0 0.0
        %917 = vmatprep.subr.mxu0 0.0
        %918 = vmatpush1.msra.mxu0 0.0
        %919 = vmatprep.subr.mxu0 0.0
        %920 = vmatpush1.msra.mxu0 0.0
        %921 = vmatprep.subr.mxu0 0.0
        %922 = vmatpush1.msra.mxu0 0.0
        %923 = vmatprep.subr.mxu0 0.0
        %924 = vmatpush1.msra.mxu0 0.0
        %925 = vmatprep.subr.mxu0 0.0
        %926 = vmatpush1.msra.mxu0 0.0
        %927 = vmatprep.mubr.f32.mxu0 0.0
        %928 = vmatmul.mubr.f32.gmra.mrb[0].mxu0 %v371
        %v929 = vpop.f32.mrb[0].mxu0
        %v930 = vadd.f32 0.0, %v929
        %v931 = vpop.f32.mrb[0].mxu0
        %932 = vdwg.mxu0
        %933 = vmatprep.subr.mxu0 0.0
        %934 = vmatpush1.msra.mxu0 %v334
        %935 = vmatprep.subr.mxu0 0.0
        %936 = vmatpush1.msra.mxu0 %v335
        %937 = vmatprep.subr.mxu0 0.0
        %938 = vmatpush1.msra.mxu0 %v336
        %939 = vmatprep.subr.mxu0 0.0
        %940 = vmatpush1.msra.mxu0 %v337
        %941 = vmatprep.subr.mxu0 0.0
        %942 = vmatpush1.msra.mxu0 0.0
        %943 = vmatprep.subr.mxu0 0.0
        %944 = vmatpush1.msra.mxu0 0.0
        %945 = vmatprep.subr.mxu0 0.0
        %946 = vmatpush1.msra.mxu0 0.0
        %947 = vmatprep.subr.mxu0 0.0
        %948 = vmatpush1.msra.mxu0 0.0
        %949 = vmatprep.subr.mxu0 0.0
        %950 = vmatpush1.msra.mxu0 0.0
        %951 = vmatprep.subr.mxu0 0.0
        %952 = vmatpush1.msra.mxu0 0.0
        %953 = vmatprep.subr.mxu0 0.0
        %954 = vmatpush1.msra.mxu0 0.0
        %955 = vmatprep.subr.mxu0 0.0
        %956 = vmatpush1.msra.mxu0 0.0
        %957 = vmatprep.subr.mxu0 0.0
        %958 = vmatpush1.msra.mxu0 0.0
        %959 = vmatprep.subr.mxu0 0.0
        %960 = vmatpush1.msra.mxu0 0.0
        %961 = vmatprep.subr.mxu0 0.0
        %962 = vmatpush1.msra.mxu0 0.0
        %963 = vmatprep.subr.mxu0 0.0
        %964 = vmatpush1.msra.mxu0 0.0
        %965 = vmatprep.subr.mxu0 0.0
        %966 = vmatpush1.msra.mxu0 0.0
        %967 = vmatprep.subr.mxu0 0.0
        %968 = vmatpush1.msra.mxu0 0.0
        %969 = vmatprep.subr.mxu0 0.0
        %970 = vmatpush1.msra.mxu0 0.0
        %971 = vmatprep.subr.mxu0 0.0
        %972 = vmatpush1.msra.mxu0 0.0
        %973 = vmatprep.subr.mxu0 0.0
        %974 = vmatpush1.msra.mxu0 0.0
        %975 = vmatprep.subr.mxu0 0.0
        %976 = vmatpush1.msra.mxu0 0.0
        %977 = vmatprep.subr.mxu0 0.0
        %978 = vmatpush1.msra.mxu0 0.0
        %979 = vmatprep.subr.mxu0 0.0
        %980 = vmatpush1.msra.mxu0 0.0
        %981 = vmatprep.subr.mxu0 0.0
        %982 = vmatpush1.msra.mxu0 0.0
        %983 = vmatprep.subr.mxu0 0.0
        %984 = vmatpush1.msra.mxu0 0.0
        %985 = vmatprep.subr.mxu0 0.0
        %986 = vmatpush1.msra.mxu0 0.0
        %987 = vmatprep.subr.mxu0 0.0
        %988 = vmatpush1.msra.mxu0 0.0
        %989 = vmatprep.subr.mxu0 0.0
        %990 = vmatpush1.msra.mxu0 0.0
        %991 = vmatprep.subr.mxu0 0.0
        %992 = vmatpush1.msra.mxu0 0.0
        %993 = vmatprep.subr.mxu0 0.0
        %994 = vmatpush1.msra.mxu0 0.0
        %995 = vmatprep.subr.mxu0 0.0
        %996 = vmatpush1.msra.mxu0 0.0
        %997 = vmatprep.mubr.f32.mxu0 0.0
        %998 = vmatmul.mubr.f32.gmra.mrb[0].mxu0 %v371
        %v999 = vpop.f32.mrb[0].mxu0
        %v1000 = vadd.f32 0.0, %v999
        %v1001 = vpop.f32.mrb[0].mxu0
        %1002 = vdwg.mxu0
        %1003 = vmatprep.subr.mxu0 0.0
        %1004 = vmatpush1.msra.mxu0 %v338
        %1005 = vmatprep.subr.mxu0 0.0
        %1006 = vmatpush1.msra.mxu0 %v339
        %1007 = vmatprep.subr.mxu0 0.0
        %1008 = vmatpush1.msra.mxu0 %v340
        %1009 = vmatprep.subr.mxu0 0.0
        %1010 = vmatpush1.msra.mxu0 %v341
        %1011 = vmatprep.subr.mxu0 0.0
        %1012 = vmatpush1.msra.mxu0 0.0
        %1013 = vmatprep.subr.mxu0 0.0
        %1014 = vmatpush1.msra.mxu0 0.0
        %1015 = vmatprep.subr.mxu0 0.0
        %1016 = vmatpush1.msra.mxu0 0.0
        %1017 = vmatprep.subr.mxu0 0.0
        %1018 = vmatpush1.msra.mxu0 0.0
        %1019 = vmatprep.subr.mxu0 0.0
        %1020 = vmatpush1.msra.mxu0 0.0
        %1021 = vmatprep.subr.mxu0 0.0
        %1022 = vmatpush1.msra.mxu0 0.0
        %1023 = vmatprep.subr.mxu0 0.0
        %1024 = vmatpush1.msra.mxu0 0.0
        %1025 = vmatprep.subr.mxu0 0.0
        %1026 = vmatpush1.msra.mxu0 0.0
        %1027 = vmatprep.subr.mxu0 0.0
        %1028 = vmatpush1.msra.mxu0 0.0
        %1029 = vmatprep.subr.mxu0 0.0
        %1030 = vmatpush1.msra.mxu0 0.0
        %1031 = vmatprep.subr.mxu0 0.0
        %1032 = vmatpush1.msra.mxu0 0.0
        %1033 = vmatprep.subr.mxu0 0.0
        %1034 = vmatpush1.msra.mxu0 0.0
        %1035 = vmatprep.subr.mxu0 0.0
        %1036 = vmatpush1.msra.mxu0 0.0
        %1037 = vmatprep.subr.mxu0 0.0
        %1038 = vmatpush1.msra.mxu0 0.0
        %1039 = vmatprep.subr.mxu0 0.0
        %1040 = vmatpush1.msra.mxu0 0.0
        %1041 = vmatprep.subr.mxu0 0.0
        %1042 = vmatpush1.msra.mxu0 0.0
        %1043 = vmatprep.subr.mxu0 0.0
        %1044 = vmatpush1.msra.mxu0 0.0
        %1045 = vmatprep.subr.mxu0 0.0
        %1046 = vmatpush1.msra.mxu0 0.0
        %1047 = vmatprep.subr.mxu0 0.0
        %1048 = vmatpush1.msra.mxu0 0.0
        %1049 = vmatprep.subr.mxu0 0.0
        %1050 = vmatpush1.msra.mxu0 0.0
        %1051 = vmatprep.subr.mxu0 0.0
        %1052 = vmatpush1.msra.mxu0 0.0
        %1053 = vmatprep.subr.mxu0 0.0
        %1054 = vmatpush1.msra.mxu0 0.0
        %1055 = vmatprep.subr.mxu0 0.0
        %1056 = vmatpush1.msra.mxu0 0.0
        %1057 = vmatprep.subr.mxu0 0.0
        %1058 = vmatpush1.msra.mxu0 0.0
        %1059 = vmatprep.subr.mxu0 0.0
        %1060 = vmatpush1.msra.mxu0 0.0
        %1061 = vmatprep.subr.mxu0 0.0
        %1062 = vmatpush1.msra.mxu0 0.0
        %1063 = vmatprep.subr.mxu0 0.0
        %1064 = vmatpush1.msra.mxu0 0.0
        %1065 = vmatprep.subr.mxu0 0.0
        %1066 = vmatpush1.msra.mxu0 0.0
        %1067 = vmatprep.mubr.f32.mxu0 0.0
        %1068 = vmatmul.mubr.f32.gmra.mrb[0].mxu0 %v371
        %v1069 = vpop.f32.mrb[0].mxu0
        %v1070 = vadd.f32 0.0, %v1069
        %v1071 = vpop.f32.mrb[0].mxu0
        %1072 = vdwg.mxu0
        %1073 = vmatprep.subr.mxu0 0.0
        %1074 = vmatpush1.msra.mxu0 %v342
        %1075 = vmatprep.subr.mxu0 0.0
        %1076 = vmatpush1.msra.mxu0 %v343
        %1077 = vmatprep.subr.mxu0 0.0
        %1078 = vmatpush1.msra.mxu0 %v344
        %1079 = vmatprep.subr.mxu0 0.0
        %1080 = vmatpush1.msra.mxu0 %v345
        %1081 = vmatprep.subr.mxu0 0.0
        %1082 = vmatpush1.msra.mxu0 0.0
        %1083 = vmatprep.subr.mxu0 0.0
        %1084 = vmatpush1.msra.mxu0 0.0
        %1085 = vmatprep.subr.mxu0 0.0
        %1086 = vmatpush1.msra.mxu0 0.0
        %1087 = vmatprep.subr.mxu0 0.0
        %1088 = vmatpush1.msra.mxu0 0.0
        %1089 = vmatprep.subr.mxu0 0.0
        %1090 = vmatpush1.msra.mxu0 0.0
        %1091 = vmatprep.subr.mxu0 0.0
        %1092 = vmatpush1.msra.mxu0 0.0
        %1093 = vmatprep.subr.mxu0 0.0
        %1094 = vmatpush1.msra.mxu0 0.0
        %1095 = vmatprep.subr.mxu0 0.0
        %1096 = vmatpush1.msra.mxu0 0.0
        %1097 = vmatprep.subr.mxu0 0.0
        %1098 = vmatpush1.msra.mxu0 0.0
        %1099 = vmatprep.subr.mxu0 0.0
        %1100 = vmatpush1.msra.mxu0 0.0
        %1101 = vmatprep.subr.mxu0 0.0
        %1102 = vmatpush1.msra.mxu0 0.0
        %1103 = vmatprep.subr.mxu0 0.0
        %1104 = vmatpush1.msra.mxu0 0.0
        %1105 = vmatprep.subr.mxu0 0.0
        %1106 = vmatpush1.msra.mxu0 0.0
        %1107 = vmatprep.subr.mxu0 0.0
        %1108 = vmatpush1.msra.mxu0 0.0
        %1109 = vmatprep.subr.mxu0 0.0
        %1110 = vmatpush1.msra.mxu0 0.0
        %1111 = vmatprep.subr.mxu0 0.0
        %1112 = vmatpush1.msra.mxu0 0.0
        %1113 = vmatprep.subr.mxu0 0.0
        %1114 = vmatpush1.msra.mxu0 0.0
        %1115 = vmatprep.subr.mxu0 0.0
        %1116 = vmatpush1.msra.mxu0 0.0
        %1117 = vmatprep.subr.mxu0 0.0
        %1118 = vmatpush1.msra.mxu0 0.0
        %1119 = vmatprep.subr.mxu0 0.0
        %1120 = vmatpush1.msra.mxu0 0.0
        %1121 = vmatprep.subr.mxu0 0.0
        %1122 = vmatpush1.msra.mxu0 0.0
        %1123 = vmatprep.subr.mxu0 0.0
        %1124 = vmatpush1.msra.mxu0 0.0
        %1125 = vmatprep.subr.mxu0 0.0
        %1126 = vmatpush1.msra.mxu0 0.0
        %1127 = vmatprep.subr.mxu0 0.0
        %1128 = vmatpush1.msra.mxu0 0.0
        %1129 = vmatprep.subr.mxu0 0.0
        %1130 = vmatpush1.msra.mxu0 0.0
        %1131 = vmatprep.subr.mxu0 0.0
        %1132 = vmatpush1.msra.mxu0 0.0
        %1133 = vmatprep.subr.mxu0 0.0
        %1134 = vmatpush1.msra.mxu0 0.0
        %1135 = vmatprep.subr.mxu0 0.0
        %1136 = vmatpush1.msra.mxu0 0.0
        %1137 = vmatprep.mubr.f32.mxu0 0.0
        %1138 = vmatmul.mubr.f32.gmra.mrb[0].mxu0 %v371
        %v1139 = vpop.f32.mrb[0].mxu0
        %v1140 = vadd.f32 0.0, %v1139
        %v1141 = vpop.f32.mrb[0].mxu0
        %1142 = vdwg.mxu0
        %1143 = vmatprep.subr.mxu0 0.0
        %1144 = vmatpush1.msra.mxu0 %v346
        %1145 = vmatprep.subr.mxu0 0.0
        %1146 = vmatpush1.msra.mxu0 %v347
        %1147 = vmatprep.subr.mxu0 0.0
        %1148 = vmatpush1.msra.mxu0 %v348
        %1149 = vmatprep.subr.mxu0 0.0
        %1150 = vmatpush1.msra.mxu0 %v349
        %1151 = vmatprep.subr.mxu0 0.0
        %1152 = vmatpush1.msra.mxu0 0.0
        %1153 = vmatprep.subr.mxu0 0.0
        %1154 = vmatpush1.msra.mxu0 0.0
        %1155 = vmatprep.subr.mxu0 0.0
        %1156 = vmatpush1.msra.mxu0 0.0
        %1157 = vmatprep.subr.mxu0 0.0
        %1158 = vmatpush1.msra.mxu0 0.0
        %1159 = vmatprep.subr.mxu0 0.0
        %1160 = vmatpush1.msra.mxu0 0.0
        %1161 = vmatprep.subr.mxu0 0.0
        %1162 = vmatpush1.msra.mxu0 0.0
        %1163 = vmatprep.subr.mxu0 0.0
        %1164 = vmatpush1.msra.mxu0 0.0
        %1165 = vmatprep.subr.mxu0 0.0
        %1166 = vmatpush1.msra.mxu0 0.0
        %1167 = vmatprep.subr.mxu0 0.0
        %1168 = vmatpush1.msra.mxu0 0.0
        %1169 = vmatprep.subr.mxu0 0.0
        %1170 = vmatpush1.msra.mxu0 0.0
        %1171 = vmatprep.subr.mxu0 0.0
        %1172 = vmatpush1.msra.mxu0 0.0
        %1173 = vmatprep.subr.mxu0 0.0
        %1174 = vmatpush1.msra.mxu0 0.0
        %1175 = vmatprep.subr.mxu0 0.0
        %1176 = vmatpush1.msra.mxu0 0.0
        %1177 = vmatprep.subr.mxu0 0.0
        %1178 = vmatpush1.msra.mxu0 0.0
        %1179 = vmatprep.subr.mxu0 0.0
        %1180 = vmatpush1.msra.mxu0 0.0
        %1181 = vmatprep.subr.mxu0 0.0
        %1182 = vmatpush1.msra.mxu0 0.0
        %1183 = vmatprep.subr.mxu0 0.0
        %1184 = vmatpush1.msra.mxu0 0.0
        %1185 = vmatprep.subr.mxu0 0.0
        %1186 = vmatpush1.msra.mxu0 0.0
        %1187 = vmatprep.subr.mxu0 0.0
        %1188 = vmatpush1.msra.mxu0 0.0
        %1189 = vmatprep.subr.mxu0 0.0
        %1190 = vmatpush1.msra.mxu0 0.0
        %1191 = vmatprep.subr.mxu0 0.0
        %1192 = vmatpush1.msra.mxu0 0.0
        %1193 = vmatprep.subr.mxu0 0.0
        %1194 = vmatpush1.msra.mxu0 0.0
        %1195 = vmatprep.subr.mxu0 0.0
        %1196 = vmatpush1.msra.mxu0 0.0
        %1197 = vmatprep.subr.mxu0 0.0
        %1198 = vmatpush1.msra.mxu0 0.0
        %1199 = vmatprep.subr.mxu0 0.0
        %1200 = vmatpush1.msra.mxu0 0.0
        %1201 = vmatprep.subr.mxu0 0.0
        %1202 = vmatpush1.msra.mxu0 0.0
        %1203 = vmatprep.subr.mxu0 0.0
        %1204 = vmatpush1.msra.mxu0 0.0
        %1205 = vmatprep.subr.mxu0 0.0
        %1206 = vmatpush1.msra.mxu0 0.0
        %1207 = vmatprep.mubr.f32.mxu0 0.0
        %1208 = vmatmul.mubr.f32.gmra.mrb[0].mxu0 %v371
        %v1209 = vpop.f32.mrb[0].mxu0
        %v1210 = vadd.f32 0.0, %v1209
        %v1211 = vpop.f32.mrb[0].mxu0
        %1212 = vdwg.mxu0
        %vm1213 = vcmask 64512
        %v1215 = vsel %vm1213, %v440, 0
        %v1218 = vsel %vm1213, %v720, 0
        %1220 = vmatprep.subr.mxu0 0.0
        %1221 = vmatpush1.xpose.msra.mxu0 %v1218
        %1222 = vmatprep.subr.mxu0 0.0
        %1223 = vmatpush1.xpose.msra.mxu0 0.0
        %1224 = vmatprep.subr.mxu0 0.0
        %1225 = vmatpush1.xpose.msra.mxu0 0.0
        %1226 = vmatprep.subr.mxu0 0.0
        %1227 = vmatpush1.xpose.msra.mxu0 0.0
        %1228 = vmatprep.subr.mxu0 0.0
        %1229 = vmatpush1.xpose.msra.mxu0 0.0
        %1230 = vmatprep.subr.mxu0 0.0
        %1231 = vmatpush1.xpose.msra.mxu0 0.0
        %1232 = vmatprep.subr.mxu0 0.0
        %1233 = vmatpush1.xpose.msra.mxu0 0.0
        %1234 = vmatprep.subr.mxu0 0.0
        %1235 = vmatpush1.xpose.msra.mxu0 0.0
        %1236 = vmatprep.subr.mxu0 0.0
        %1237 = vmatpush1.xpose.msra.mxu0 0.0
        %1238 = vmatprep.subr.mxu0 0.0
        %1239 = vmatpush1.xpose.msra.mxu0 0.0
        %1240 = vmatprep.subr.mxu0 0.0
        %1241 = vmatpush1.xpose.msra.mxu0 0.0
        %1242 = vmatprep.subr.mxu0 0.0
        %1243 = vmatpush1.xpose.msra.mxu0 0.0
        %1244 = vmatprep.subr.mxu0 0.0
        %1245 = vmatpush1.xpose.msra.mxu0 0.0
        %1246 = vmatprep.subr.mxu0 0.0
        %1247 = vmatpush1.xpose.msra.mxu0 0.0
        %1248 = vmatprep.subr.mxu0 0.0
        %1249 = vmatpush1.xpose.msra.mxu0 0.0
        %1250 = vmatprep.subr.mxu0 0.0
        %1251 = vmatpush1.xpose.msra.mxu0 0.0
        %1252 = vmatprep.subr.mxu0 0.0
        %1253 = vmatpush1.xpose.msra.mxu0 0.0
        %1254 = vmatprep.subr.mxu0 0.0
        %1255 = vmatpush1.xpose.msra.mxu0 0.0
        %1256 = vmatprep.subr.mxu0 0.0
        %1257 = vmatpush1.xpose.msra.mxu0 0.0
        %1258 = vmatprep.subr.mxu0 0.0
        %1259 = vmatpush1.xpose.msra.mxu0 0.0
        %1260 = vmatprep.subr.mxu0 0.0
        %1261 = vmatpush1.xpose.msra.mxu0 0.0
        %1262 = vmatprep.subr.mxu0 0.0
        %1263 = vmatpush1.xpose.msra.mxu0 0.0
        %1264 = vmatprep.subr.mxu0 0.0
        %1265 = vmatpush1.xpose.msra.mxu0 0.0
        %1266 = vmatprep.subr.mxu0 0.0
        %1267 = vmatpush1.xpose.msra.mxu0 0.0
        %1268 = vmatprep.subr.mxu0 0.0
        %1269 = vmatpush1.xpose.msra.mxu0 0.0
        %1270 = vmatprep.subr.mxu0 0.0
        %1271 = vmatpush1.xpose.msra.mxu0 0.0
        %1272 = vmatprep.subr.mxu0 0.0
        %1273 = vmatpush1.xpose.msra.mxu0 0.0
        %1274 = vmatprep.subr.mxu0 0.0
        %1275 = vmatpush1.xpose.msra.mxu0 0.0
        %1276 = vmatprep.subr.mxu0 0.0
        %1277 = vmatpush1.xpose.msra.mxu0 0.0
        %1278 = vmatprep.subr.mxu0 0.0
        %1279 = vmatpush1.xpose.msra.mxu0 0.0
        %1280 = vmatprep.subr.mxu0 0.0
        %1281 = vmatpush1.xpose.msra.mxu0 0.0
        %1282 = vmatprep.subr.mxu0 0.0
        %1283 = vmatpush1.xpose.msra.mxu0 0.0
        %1284 = vmatprep.mubr.f32.mxu0 0.0
        %1285 = vmatmul.mubr.f32.gmra.mrb[0].mxu0 %v1215
        %v1286 = vpop.f32.mrb[0].mxu0
        %v1287 = vadd.f32 0.0, %v1286
        %v1288 = vpop.f32.mrb[0].mxu0
        %1289 = vdwg.mxu0
        %v1291 = vsel %vm1213, %v510, 0
        %v1294 = vsel %vm1213, %v790, 0
        %1296 = vmatprep.subr.mxu0 0.0
        %1297 = vmatpush1.xpose.msra.mxu0 %v1294
        %1298 = vmatprep.subr.mxu0 0.0
        %1299 = vmatpush1.xpose.msra.mxu0 0.0
        %1300 = vmatprep.subr.mxu0 0.0
        %1301 = vmatpush1.xpose.msra.mxu0 0.0
        %1302 = vmatprep.subr.mxu0 0.0
        %1303 = vmatpush1.xpose.msra.mxu0 0.0
        %1304 = vmatprep.subr.mxu0 0.0
        %1305 = vmatpush1.xpose.msra.mxu0 0.0
        %1306 = vmatprep.subr.mxu0 0.0
        %1307 = vmatpush1.xpose.msra.mxu0 0.0
        %1308 = vmatprep.subr.mxu0 0.0
        %1309 = vmatpush1.xpose.msra.mxu0 0.0
        %1310 = vmatprep.subr.mxu0 0.0
        %1311 = vmatpush1.xpose.msra.mxu0 0.0
        %1312 = vmatprep.subr.mxu0 0.0
        %1313 = vmatpush1.xpose.msra.mxu0 0.0
        %1314 = vmatprep.subr.mxu0 0.0
        %1315 = vmatpush1.xpose.msra.mxu0 0.0
        %1316 = vmatprep.subr.mxu0 0.0
        %1317 = vmatpush1.xpose.msra.mxu0 0.0
        %1318 = vmatprep.subr.mxu0 0.0
        %1319 = vmatpush1.xpose.msra.mxu0 0.0
        %1320 = vmatprep.subr.mxu0 0.0
        %1321 = vmatpush1.xpose.msra.mxu0 0.0
        %1322 = vmatprep.subr.mxu0 0.0
        %1323 = vmatpush1.xpose.msra.mxu0 0.0
        %1324 = vmatprep.subr.mxu0 0.0
        %1325 = vmatpush1.xpose.msra.mxu0 0.0
        %1326 = vmatprep.subr.mxu0 0.0
        %1327 = vmatpush1.xpose.msra.mxu0 0.0
        %1328 = vmatprep.subr.mxu0 0.0
        %1329 = vmatpush1.xpose.msra.mxu0 0.0
        %1330 = vmatprep.subr.mxu0 0.0
        %1331 = vmatpush1.xpose.msra.mxu0 0.0
        %1332 = vmatprep.subr.mxu0 0.0
        %1333 = vmatpush1.xpose.msra.mxu0 0.0
        %1334 = vmatprep.subr.mxu0 0.0
        %1335 = vmatpush1.xpose.msra.mxu0 0.0
        %1336 = vmatprep.subr.mxu0 0.0
        %1337 = vmatpush1.xpose.msra.mxu0 0.0
        %1338 = vmatprep.subr.mxu0 0.0
        %1339 = vmatpush1.xpose.msra.mxu0 0.0
        %1340 = vmatprep.subr.mxu0 0.0
        %1341 = vmatpush1.xpose.msra.mxu0 0.0
        %1342 = vmatprep.subr.mxu0 0.0
        %1343 = vmatpush1.xpose.msra.mxu0 0.0
        %1344 = vmatprep.subr.mxu0 0.0
        %1345 = vmatpush1.xpose.msra.mxu0 0.0
        %1346 = vmatprep.subr.mxu0 0.0
        %1347 = vmatpush1.xpose.msra.mxu0 0.0
        %1348 = vmatprep.subr.mxu0 0.0
        %1349 = vmatpush1.xpose.msra.mxu0 0.0
        %1350 = vmatprep.subr.mxu0 0.0
        %1351 = vmatpush1.xpose.msra.mxu0 0.0
        %1352 = vmatprep.subr.mxu0 0.0
        %1353 = vmatpush1.xpose.msra.mxu0 0.0
        %1354 = vmatprep.subr.mxu0 0.0
        %1355 = vmatpush1.xpose.msra.mxu0 0.0
        %1356 = vmatprep.subr.mxu0 0.0
        %1357 = vmatpush1.xpose.msra.mxu0 0.0
        %1358 = vmatprep.subr.mxu0 0.0
        %1359 = vmatpush1.xpose.msra.mxu0 0.0
        %1360 = vmatprep.mubr.f32.mxu0 0.0
        %1361 = vmatmul.mubr.f32.gmra.mrb[0].mxu0 %v1291
        %v1362 = vpop.f32.mrb[0].mxu0
        %v1363 = vadd.f32 0.0, %v1362
        %v1364 = vpop.f32.mrb[0].mxu0
        %1365 = vdwg.mxu0
        %v1367 = vsel %vm1213, %v580, 0
        %v1370 = vsel %vm1213, %v860, 0
        %1372 = vmatprep.subr.mxu0 0.0
        %1373 = vmatpush1.xpose.msra.mxu0 %v1370
        %1374 = vmatprep.subr.mxu0 0.0
        %1375 = vmatpush1.xpose.msra.mxu0 0.0
        %1376 = vmatprep.subr.mxu0 0.0
        %1377 = vmatpush1.xpose.msra.mxu0 0.0
        %1378 = vmatprep.subr.mxu0 0.0
        %1379 = vmatpush1.xpose.msra.mxu0 0.0
        %1380 = vmatprep.subr.mxu0 0.0
        %1381 = vmatpush1.xpose.msra.mxu0 0.0
        %1382 = vmatprep.subr.mxu0 0.0
        %1383 = vmatpush1.xpose.msra.mxu0 0.0
        %1384 = vmatprep.subr.mxu0 0.0
        %1385 = vmatpush1.xpose.msra.mxu0 0.0
        %1386 = vmatprep.subr.mxu0 0.0
        %1387 = vmatpush1.xpose.msra.mxu0 0.0
        %1388 = vmatprep.subr.mxu0 0.0
        %1389 = vmatpush1.xpose.msra.mxu0 0.0
        %1390 = vmatprep.subr.mxu0 0.0
        %1391 = vmatpush1.xpose.msra.mxu0 0.0
        %1392 = vmatprep.subr.mxu0 0.0
        %1393 = vmatpush1.xpose.msra.mxu0 0.0
        %1394 = vmatprep.subr.mxu0 0.0
        %1395 = vmatpush1.xpose.msra.mxu0 0.0
        %1396 = vmatprep.subr.mxu0 0.0
        %1397 = vmatpush1.xpose.msra.mxu0 0.0
        %1398 = vmatprep.subr.mxu0 0.0
        %1399 = vmatpush1.xpose.msra.mxu0 0.0
        %1400 = vmatprep.subr.mxu0 0.0
        %1401 = vmatpush1.xpose.msra.mxu0 0.0
        %1402 = vmatprep.subr.mxu0 0.0
        %1403 = vmatpush1.xpose.msra.mxu0 0.0
        %1404 = vmatprep.subr.mxu0 0.0
        %1405 = vmatpush1.xpose.msra.mxu0 0.0
        %1406 = vmatprep.subr.mxu0 0.0
        %1407 = vmatpush1.xpose.msra.mxu0 0.0
        %1408 = vmatprep.subr.mxu0 0.0
        %1409 = vmatpush1.xpose.msra.mxu0 0.0
        %1410 = vmatprep.subr.mxu0 0.0
        %1411 = vmatpush1.xpose.msra.mxu0 0.0
        %1412 = vmatprep.subr.mxu0 0.0
        %1413 = vmatpush1.xpose.msra.mxu0 0.0
        %1414 = vmatprep.subr.mxu0 0.0
        %1415 = vmatpush1.xpose.msra.mxu0 0.0
        %1416 = vmatprep.subr.mxu0 0.0
        %1417 = vmatpush1.xpose.msra.mxu0 0.0
        %1418 = vmatprep.subr.mxu0 0.0
        %1419 = vmatpush1.xpose.msra.mxu0 0.0
        %1420 = vmatprep.subr.mxu0 0.0
        %1421 = vmatpush1.xpose.msra.mxu0 0.0
        %1422 = vmatprep.subr.mxu0 0.0
        %1423 = vmatpush1.xpose.msra.mxu0 0.0
        %1424 = vmatprep.subr.mxu0 0.0
        %1425 = vmatpush1.xpose.msra.mxu0 0.0
        %1426 = vmatprep.subr.mxu0 0.0
        %1427 = vmatpush1.xpose.msra.mxu0 0.0
        %1428 = vmatprep.subr.mxu0 0.0
        %1429 = vmatpush1.xpose.msra.mxu0 0.0
        %1430 = vmatprep.subr.mxu0 0.0
        %1431 = vmatpush1.xpose.msra.mxu0 0.0
        %1432 = vmatprep.subr.mxu0 0.0
        %1433 = vmatpush1.xpose.msra.mxu0 0.0
        %1434 = vmatprep.subr.mxu0 0.0
        %1435 = vmatpush1.xpose.msra.mxu0 0.0
        %1436 = vmatprep.mubr.f32.mxu0 0.0
        %1437 = vmatmul.mubr.f32.gmra.mrb[0].mxu0 %v1367
        %v1438 = vpop.f32.mrb[0].mxu0
        %v1439 = vadd.f32 0.0, %v1438
        %v1440 = vpop.f32.mrb[0].mxu0
        %1441 = vdwg.mxu0
        %v1443 = vsel %vm1213, %v650, 0
        %v1446 = vsel %vm1213, %v930, 0
        %1448 = vmatprep.subr.mxu0 0.0
        %1449 = vmatpush1.xpose.msra.mxu0 %v1446
        %1450 = vmatprep.subr.mxu0 0.0
        %1451 = vmatpush1.xpose.msra.mxu0 0.0
        %1452 = vmatprep.subr.mxu0 0.0
        %1453 = vmatpush1.xpose.msra.mxu0 0.0
        %1454 = vmatprep.subr.mxu0 0.0
        %1455 = vmatpush1.xpose.msra.mxu0 0.0
        %1456 = vmatprep.subr.mxu0 0.0
        %1457 = vmatpush1.xpose.msra.mxu0 0.0
        %1458 = vmatprep.subr.mxu0 0.0
        %1459 = vmatpush1.xpose.msra.mxu0 0.0
        %1460 = vmatprep.subr.mxu0 0.0
        %1461 = vmatpush1.xpose.msra.mxu0 0.0
        %1462 = vmatprep.subr.mxu0 0.0
        %1463 = vmatpush1.xpose.msra.mxu0 0.0
        %1464 = vmatprep.subr.mxu0 0.0
        %1465 = vmatpush1.xpose.msra.mxu0 0.0
        %1466 = vmatprep.subr.mxu0 0.0
        %1467 = vmatpush1.xpose.msra.mxu0 0.0
        %1468 = vmatprep.subr.mxu0 0.0
        %1469 = vmatpush1.xpose.msra.mxu0 0.0
        %1470 = vmatprep.subr.mxu0 0.0
        %1471 = vmatpush1.xpose.msra.mxu0 0.0
        %1472 = vmatprep.subr.mxu0 0.0
        %1473 = vmatpush1.xpose.msra.mxu0 0.0
        %1474 = vmatprep.subr.mxu0 0.0
        %1475 = vmatpush1.xpose.msra.mxu0 0.0
        %1476 = vmatprep.subr.mxu0 0.0
        %1477 = vmatpush1.xpose.msra.mxu0 0.0
        %1478 = vmatprep.subr.mxu0 0.0
        %1479 = vmatpush1.xpose.msra.mxu0 0.0
        %1480 = vmatprep.subr.mxu0 0.0
        %1481 = vmatpush1.xpose.msra.mxu0 0.0
        %1482 = vmatprep.subr.mxu0 0.0
        %1483 = vmatpush1.xpose.msra.mxu0 0.0
        %1484 = vmatprep.subr.mxu0 0.0
        %1485 = vmatpush1.xpose.msra.mxu0 0.0
        %1486 = vmatprep.subr.mxu0 0.0
        %1487 = vmatpush1.xpose.msra.mxu0 0.0
        %1488 = vmatprep.subr.mxu0 0.0
        %1489 = vmatpush1.xpose.msra.mxu0 0.0
        %1490 = vmatprep.subr.mxu0 0.0
        %1491 = vmatpush1.xpose.msra.mxu0 0.0
        %1492 = vmatprep.subr.mxu0 0.0
        %1493 = vmatpush1.xpose.msra.mxu0 0.0
        %1494 = vmatprep.subr.mxu0 0.0
        %1495 = vmatpush1.xpose.msra.mxu0 0.0
        %1496 = vmatprep.subr.mxu0 0.0
        %1497 = vmatpush1.xpose.msra.mxu0 0.0
        %1498 = vmatprep.subr.mxu0 0.0
        %1499 = vmatpush1.xpose.msra.mxu0 0.0
        %1500 = vmatprep.subr.mxu0 0.0
        %1501 = vmatpush1.xpose.msra.mxu0 0.0
        %1502 = vmatprep.subr.mxu0 0.0
        %1503 = vmatpush1.xpose.msra.mxu0 0.0
        %1504 = vmatprep.subr.mxu0 0.0
        %1505 = vmatpush1.xpose.msra.mxu0 0.0
        %1506 = vmatprep.subr.mxu0 0.0
        %1507 = vmatpush1.xpose.msra.mxu0 0.0
        %1508 = vmatprep.subr.mxu0 0.0
        %1509 = vmatpush1.xpose.msra.mxu0 0.0
        %1510 = vmatprep.subr.mxu0 0.0
        %1511 = vmatpush1.xpose.msra.mxu0 0.0
        %1512 = vmatprep.mubr.f32.mxu0 0.0
        %1513 = vmatmul.mubr.f32.gmra.mrb[0].mxu0 %v1443
        %v1514 = vpop.f32.mrb[0].mxu0
        %v1515 = vadd.f32 0.0, %v1514
        %v1516 = vpop.f32.mrb[0].mxu0
        %1517 = vdwg.mxu0
        %v1518 = vsel %vm1213, %v1287, -inf
        %1519 = vmax.xlane.f32.xlu0 %v1518
        %v1520 = vpop.xlane.xlu0 %1519
        %v1521 = vsel %vm1213, %v1363, -inf
        %1522 = vmax.xlane.f32.xlu0 %v1521
        %v1523 = vpop.xlane.xlu0 %1522
        %v1524 = vsel %vm1213, %v1439, -inf
        %1525 = vmax.xlane.f32.xlu0 %v1524
        %v1526 = vpop.xlane.xlu0 %1525
        %v1527 = vsel %vm1213, %v1515, -inf
        %1528 = vmax.xlane.f32.xlu0 %v1527
        %v1529 = vpop.xlane.xlu0 %1528
        %v1530 = vsub.f32 %v1287, %v1520
        %v1531 = vsub.f32 %v1363, %v1523
        %v1532 = vsub.f32 %v1439, %v1526
        %v1533 = vsub.f32 %v1515, %v1529
        %v1534 = vmul.f32 %v1530, 1.442695
        %v1535 = vpow.pop %v1534
        %v1536 = vmul.f32 %v1531, 1.442695
        %v1537 = vpow.pop %v1536
        %v1538 = vmul.f32 %v1532, 1.442695
        %v1539 = vpow.pop %v1538
        %v1540 = vmul.f32 %v1533, 1.442695
        %v1541 = vpow.pop %v1540
        %v1542 = vsel %vm1213, %v1535, 0.0
        %1543 = vadd.xlane.f32.xlu0 %v1542
        %v1544 = vpop.xlane.xlu0 %1543
        %v1545 = vsel %vm1213, %v1537, 0.0
        %1546 = vadd.xlane.f32.xlu0 %v1545
        %v1547 = vpop.xlane.xlu0 %1546
        %v1548 = vsel %vm1213, %v1539, 0.0
        %1549 = vadd.xlane.f32.xlu0 %v1548
        %v1550 = vpop.xlane.xlu0 %1549
        %v1551 = vsel %vm1213, %v1541, 0.0
        %1552 = vadd.xlane.f32.xlu0 %v1551
        %v1553 = vpop.xlane.xlu0 %1552
        %v1554 = vrcp.pop %v1544
        %v1555 = vmul.f32 %v1535, %v1554
        %v1556 = vrcp.pop %v1547
        %v1557 = vmul.f32 %v1537, %v1556
        %v1558 = vrcp.pop %v1550
        %v1559 = vmul.f32 %v1539, %v1558
        %v1560 = vrcp.pop %v1553
        %v1561 = vmul.f32 %v1541, %v1560
        %v1563 = vsel %vm1213, %v1555, 0
        %1565 = vmatprep.subr.mxu0 0.0
        %1566 = vmatpush1.msra.mxu0 %v1000
        %1567 = vmatprep.subr.mxu0 0.0
        %1568 = vmatpush1.msra.mxu0 0.0
        %1569 = vmatprep.subr.mxu0 0.0
        %1570 = vmatpush1.msra.mxu0 0.0
        %1571 = vmatprep.subr.mxu0 0.0
        %1572 = vmatpush1.msra.mxu0 0.0
        %1573 = vmatprep.subr.mxu0 0.0
        %1574 = vmatpush1.msra.mxu0 0.0
        %1575 = vmatprep.subr.mxu0 0.0
        %1576 = vmatpush1.msra.mxu0 0.0
        %1577 = vmatprep.subr.mxu0 0.0
        %1578 = vmatpush1.msra.mxu0 0.0
        %1579 = vmatprep.subr.mxu0 0.0
        %1580 = vmatpush1.msra.mxu0 0.0
        %1581 = vmatprep.subr.mxu0 0.0
        %1582 = vmatpush1.msra.mxu0 0.0
        %1583 = vmatprep.subr.mxu0 0.0
        %1584 = vmatpush1.msra.mxu0 0.0
        %1585 = vmatprep.subr.mxu0 0.0
        %1586 = vmatpush1.msra.mxu0 0.0
        %1587 = vmatprep.subr.mxu0 0.0
        %1588 = vmatpush1.msra.mxu0 0.0
        %1589 = vmatprep.subr.mxu0 0.0
        %1590 = vmatpush1.msra.mxu0 0.0
        %1591 = vmatprep.subr.mxu0 0.0
        %1592 = vmatpush1.msra.mxu0 0.0
        %1593 = vmatprep.subr.mxu0 0.0
        %1594 = vmatpush1.msra.mxu0 0.0
        %1595 = vmatprep.subr.mxu0 0.0
        %1596 = vmatpush1.msra.mxu0 0.0
        %1597 = vmatprep.subr.mxu0 0.0
        %1598 = vmatpush1.msra.mxu0 0.0
        %1599 = vmatprep.subr.mxu0 0.0
        %1600 = vmatpush1.msra.mxu0 0.0
        %1601 = vmatprep.subr.mxu0 0.0
        %1602 = vmatpush1.msra.mxu0 0.0
        %1603 = vmatprep.subr.mxu0 0.0
        %1604 = vmatpush1.msra.mxu0 0.0
        %1605 = vmatprep.subr.mxu0 0.0
        %1606 = vmatpush1.msra.mxu0 0.0
        %1607 = vmatprep.subr.mxu0 0.0
        %1608 = vmatpush1.msra.mxu0 0.0
        %1609 = vmatprep.subr.mxu0 0.0
        %1610 = vmatpush1.msra.mxu0 0.0
        %1611 = vmatprep.subr.mxu0 0.0
        %1612 = vmatpush1.msra.mxu0 0.0
        %1613 = vmatprep.subr.mxu0 0.0
        %1614 = vmatpush1.msra.mxu0 0.0
        %1615 = vmatprep.subr.mxu0 0.0
        %1616 = vmatpush1.msra.mxu0 0.0
        %1617 = vmatprep.subr.mxu0 0.0
        %1618 = vmatpush1.msra.mxu0 0.0
        %1619 = vmatprep.subr.mxu0 0.0
        %1620 = vmatpush1.msra.mxu0 0.0
        %1621 = vmatprep.subr.mxu0 0.0
        %1622 = vmatpush1.msra.mxu0 0.0
        %1623 = vmatprep.subr.mxu0 0.0
        %1624 = vmatpush1.msra.mxu0 0.0
        %1625 = vmatprep.subr.mxu0 0.0
        %1626 = vmatpush1.msra.mxu0 0.0
        %1627 = vmatprep.subr.mxu0 0.0
        %1628 = vmatpush1.msra.mxu0 0.0
        %1629 = vmatprep.mubr.f32.mxu0 0.0
        %1630 = vmatmul.mubr.f32.gmra.mrb[0].mxu0 %v1563
        %v1631 = vpop.f32.mrb[0].mxu0
        %v1632 = vadd.f32 0.0, %v1631
        %v1633 = vpop.f32.mrb[0].mxu0
        %1634 = vdwg.mxu0
        %v1636 = vsel %vm1213, %v1557, 0
        %1638 = vmatprep.subr.mxu0 0.0
        %1639 = vmatpush1.msra.mxu0 %v1070
        %1640 = vmatprep.subr.mxu0 0.0
        %1641 = vmatpush1.msra.mxu0 0.0
        %1642 = vmatprep.subr.mxu0 0.0
        %1643 = vmatpush1.msra.mxu0 0.0
        %1644 = vmatprep.subr.mxu0 0.0
        %1645 = vmatpush1.msra.mxu0 0.0
        %1646 = vmatprep.subr.mxu0 0.0
        %1647 = vmatpush1.msra.mxu0 0.0
        %1648 = vmatprep.subr.mxu0 0.0
        %1649 = vmatpush1.msra.mxu0 0.0
        %1650 = vmatprep.subr.mxu0 0.0
        %1651 = vmatpush1.msra.mxu0 0.0
        %1652 = vmatprep.subr.mxu0 0.0
        %1653 = vmatpush1.msra.mxu0 0.0
        %1654 = vmatprep.subr.mxu0 0.0
        %1655 = vmatpush1.msra.mxu0 0.0
        %1656 = vmatprep.subr.mxu0 0.0
        %1657 = vmatpush1.msra.mxu0 0.0
        %1658 = vmatprep.subr.mxu0 0.0
        %1659 = vmatpush1.msra.mxu0 0.0
        %1660 = vmatprep.subr.mxu0 0.0
        %1661 = vmatpush1.msra.mxu0 0.0
        %1662 = vmatprep.subr.mxu0 0.0
        %1663 = vmatpush1.msra.mxu0 0.0
        %1664 = vmatprep.subr.mxu0 0.0
        %1665 = vmatpush1.msra.mxu0 0.0
        %1666 = vmatprep.subr.mxu0 0.0
        %1667 = vmatpush1.msra.mxu0 0.0
        %1668 = vmatprep.subr.mxu0 0.0
        %1669 = vmatpush1.msra.mxu0 0.0
        %1670 = vmatprep.subr.mxu0 0.0
        %1671 = vmatpush1.msra.mxu0 0.0
        %1672 = vmatprep.subr.mxu0 0.0
        %1673 = vmatpush1.msra.mxu0 0.0
        %1674 = vmatprep.subr.mxu0 0.0
        %1675 = vmatpush1.msra.mxu0 0.0
        %1676 = vmatprep.subr.mxu0 0.0
        %1677 = vmatpush1.msra.mxu0 0.0
        %1678 = vmatprep.subr.mxu0 0.0
        %1679 = vmatpush1.msra.mxu0 0.0
        %1680 = vmatprep.subr.mxu0 0.0
        %1681 = vmatpush1.msra.mxu0 0.0
        %1682 = vmatprep.subr.mxu0 0.0
        %1683 = vmatpush1.msra.mxu0 0.0
        %1684 = vmatprep.subr.mxu0 0.0
        %1685 = vmatpush1.msra.mxu0 0.0
        %1686 = vmatprep.subr.mxu0 0.0
        %1687 = vmatpush1.msra.mxu0 0.0
        %1688 = vmatprep.subr.mxu0 0.0
        %1689 = vmatpush1.msra.mxu0 0.0
        %1690 = vmatprep.subr.mxu0 0.0
        %1691 = vmatpush1.msra.mxu0 0.0
        %1692 = vmatprep.subr.mxu0 0.0
        %1693 = vmatpush1.msra.mxu0 0.0
        %1694 = vmatprep.subr.mxu0 0.0
        %1695 = vmatpush1.msra.mxu0 0.0
        %1696 = vmatprep.subr.mxu0 0.0
        %1697 = vmatpush1.msra.mxu0 0.0
        %1698 = vmatprep.subr.mxu0 0.0
        %1699 = vmatpush1.msra.mxu0 0.0
        %1700 = vmatprep.subr.mxu0 0.0
        %1701 = vmatpush1.msra.mxu0 0.0
        %1702 = vmatprep.mubr.f32.mxu0 0.0
        %1703 = vmatmul.mubr.f32.gmra.mrb[0].mxu0 %v1636
        %v1704 = vpop.f32.mrb[0].mxu0
        %v1705 = vadd.f32 0.0, %v1704
        %v1706 = vpop.f32.mrb[0].mxu0
        %1707 = vdwg.mxu0
        %v1709 = vsel %vm1213, %v1559, 0
        %1711 = vmatprep.subr.mxu0 0.0
        %1712 = vmatpush1.msra.mxu0 %v1140
        %1713 = vmatprep.subr.mxu0 0.0
        %1714 = vmatpush1.msra.mxu0 0.0
        %1715 = vmatprep.subr.mxu0 0.0
        %1716 = vmatpush1.msra.mxu0 0.0
        %1717 = vmatprep.subr.mxu0 0.0
        %1718 = vmatpush1.msra.mxu0 0.0
        %1719 = vmatprep.subr.mxu0 0.0
        %1720 = vmatpush1.msra.mxu0 0.0
        %1721 = vmatprep.subr.mxu0 0.0
        %1722 = vmatpush1.msra.mxu0 0.0
        %1723 = vmatprep.subr.mxu0 0.0
        %1724 = vmatpush1.msra.mxu0 0.0
        %1725 = vmatprep.subr.mxu0 0.0
        %1726 = vmatpush1.msra.mxu0 0.0
        %1727 = vmatprep.subr.mxu0 0.0
        %1728 = vmatpush1.msra.mxu0 0.0
        %1729 = vmatprep.subr.mxu0 0.0
        %1730 = vmatpush1.msra.mxu0 0.0
        %1731 = vmatprep.subr.mxu0 0.0
        %1732 = vmatpush1.msra.mxu0 0.0
        %1733 = vmatprep.subr.mxu0 0.0
        %1734 = vmatpush1.msra.mxu0 0.0
        %1735 = vmatprep.subr.mxu0 0.0
        %1736 = vmatpush1.msra.mxu0 0.0
        %1737 = vmatprep.subr.mxu0 0.0
        %1738 = vmatpush1.msra.mxu0 0.0
        %1739 = vmatprep.subr.mxu0 0.0
        %1740 = vmatpush1.msra.mxu0 0.0
        %1741 = vmatprep.subr.mxu0 0.0
        %1742 = vmatpush1.msra.mxu0 0.0
        %1743 = vmatprep.subr.mxu0 0.0
        %1744 = vmatpush1.msra.mxu0 0.0
        %1745 = vmatprep.subr.mxu0 0.0
        %1746 = vmatpush1.msra.mxu0 0.0
        %1747 = vmatprep.subr.mxu0 0.0
        %1748 = vmatpush1.msra.mxu0 0.0
        %1749 = vmatprep.subr.mxu0 0.0
        %1750 = vmatpush1.msra.mxu0 0.0
        %1751 = vmatprep.subr.mxu0 0.0
        %1752 = vmatpush1.msra.mxu0 0.0
        %1753 = vmatprep.subr.mxu0 0.0
        %1754 = vmatpush1.msra.mxu0 0.0
        %1755 = vmatprep.subr.mxu0 0.0
        %1756 = vmatpush1.msra.mxu0 0.0
        %1757 = vmatprep.subr.mxu0 0.0
        %1758 = vmatpush1.msra.mxu0 0.0
        %1759 = vmatprep.subr.mxu0 0.0
        %1760 = vmatpush1.msra.mxu0 0.0
        %1761 = vmatprep.subr.mxu0 0.0
        %1762 = vmatpush1.msra.mxu0 0.0
        %1763 = vmatprep.subr.mxu0 0.0
        %1764 = vmatpush1.msra.mxu0 0.0
        %1765 = vmatprep.subr.mxu0 0.0
        %1766 = vmatpush1.msra.mxu0 0.0
        %1767 = vmatprep.subr.mxu0 0.0
        %1768 = vmatpush1.msra.mxu0 0.0
        %1769 = vmatprep.subr.mxu0 0.0
        %1770 = vmatpush1.msra.mxu0 0.0
        %1771 = vmatprep.subr.mxu0 0.0
        %1772 = vmatpush1.msra.mxu0 0.0
        %1773 = vmatprep.subr.mxu0 0.0
        %1774 = vmatpush1.msra.mxu0 0.0
        %1775 = vmatprep.mubr.f32.mxu0 0.0
        %1776 = vmatmul.mubr.f32.gmra.mrb[0].mxu0 %v1709
        %v1777 = vpop.f32.mrb[0].mxu0
        %v1778 = vadd.f32 0.0, %v1777
        %v1779 = vpop.f32.mrb[0].mxu0
        %1780 = vdwg.mxu0
        %v1782 = vsel %vm1213, %v1561, 0
        %1784 = vmatprep.subr.mxu0 0.0
        %1785 = vmatpush1.msra.mxu0 %v1210
        %1786 = vmatprep.subr.mxu0 0.0
        %1787 = vmatpush1.msra.mxu0 0.0
        %1788 = vmatprep.subr.mxu0 0.0
        %1789 = vmatpush1.msra.mxu0 0.0
        %1790 = vmatprep.subr.mxu0 0.0
        %1791 = vmatpush1.msra.mxu0 0.0
        %1792 = vmatprep.subr.mxu0 0.0
        %1793 = vmatpush1.msra.mxu0 0.0
        %1794 = vmatprep.subr.mxu0 0.0
        %1795 = vmatpush1.msra.mxu0 0.0
        %1796 = vmatprep.subr.mxu0 0.0
        %1797 = vmatpush1.msra.mxu0 0.0
        %1798 = vmatprep.subr.mxu0 0.0
        %1799 = vmatpush1.msra.mxu0 0.0
        %1800 = vmatprep.subr.mxu0 0.0
        %1801 = vmatpush1.msra.mxu0 0.0
        %1802 = vmatprep.subr.mxu0 0.0
        %1803 = vmatpush1.msra.mxu0 0.0
        %1804 = vmatprep.subr.mxu0 0.0
        %1805 = vmatpush1.msra.mxu0 0.0
        %1806 = vmatprep.subr.mxu0 0.0
        %1807 = vmatpush1.msra.mxu0 0.0
        %1808 = vmatprep.subr.mxu0 0.0
        %1809 = vmatpush1.msra.mxu0 0.0
        %1810 = vmatprep.subr.mxu0 0.0
        %1811 = vmatpush1.msra.mxu0 0.0
        %1812 = vmatprep.subr.mxu0 0.0
        %1813 = vmatpush1.msra.mxu0 0.0
        %1814 = vmatprep.subr.mxu0 0.0
        %1815 = vmatpush1.msra.mxu0 0.0
        %1816 = vmatprep.subr.mxu0 0.0
        %1817 = vmatpush1.msra.mxu0 0.0
        %1818 = vmatprep.subr.mxu0 0.0
        %1819 = vmatpush1.msra.mxu0 0.0
        %1820 = vmatprep.subr.mxu0 0.0
        %1821 = vmatpush1.msra.mxu0 0.0
        %1822 = vmatprep.subr.mxu0 0.0
        %1823 = vmatpush1.msra.mxu0 0.0
        %1824 = vmatprep.subr.mxu0 0.0
        %1825 = vmatpush1.msra.mxu0 0.0
        %1826 = vmatprep.subr.mxu0 0.0
        %1827 = vmatpush1.msra.mxu0 0.0
        %1828 = vmatprep.subr.mxu0 0.0
        %1829 = vmatpush1.msra.mxu0 0.0
        %1830 = vmatprep.subr.mxu0 0.0
        %1831 = vmatpush1.msra.mxu0 0.0
        %1832 = vmatprep.subr.mxu0 0.0
        %1833 = vmatpush1.msra.mxu0 0.0
        %1834 = vmatprep.subr.mxu0 0.0
        %1835 = vmatpush1.msra.mxu0 0.0
        %1836 = vmatprep.subr.mxu0 0.0
        %1837 = vmatpush1.msra.mxu0 0.0
        %1838 = vmatprep.subr.mxu0 0.0
        %1839 = vmatpush1.msra.mxu0 0.0
        %1840 = vmatprep.subr.mxu0 0.0
        %1841 = vmatpush1.msra.mxu0 0.0
        %1842 = vmatprep.subr.mxu0 0.0
        %1843 = vmatpush1.msra.mxu0 0.0
        %1844 = vmatprep.subr.mxu0 0.0
        %1845 = vmatpush1.msra.mxu0 0.0
        %1846 = vmatprep.subr.mxu0 0.0
        %1847 = vmatpush1.msra.mxu0 0.0
        %1848 = vmatprep.mubr.f32.mxu0 0.0
        %1849 = vmatmul.mubr.f32.gmra.mrb[0].mxu0 %v1782
        %v1850 = vpop.f32.mrb[0].mxu0
        %v1851 = vadd.f32 0.0, %v1850
        %v1852 = vpop.f32.mrb[0].mxu0
        %1853 = vdwg.mxu0
        %1855 = vrot.lane.b32.xlu0 %v1705, 8
        %v1856 = vpop.permute.xlu0 %1855
        %1859 = vrot.lane.b32.xlu0 %v1778, 16
        %v1860 = vpop.permute.xlu0 %1859
        %1863 = vrot.lane.b32.xlu0 %v1851, 24
        %v1864 = vpop.permute.xlu0 %1863
        %v1866 = vsel %vm1213, %v1632, %v1856
        %vm1867 = vcmask 130048
        %v1868 = vsel %vm1867, %v1866, %v1860
        %vm1869 = vcmask 195584
        %v1870 = vsel %vm1869, %v1868, %v1864
        %v1872 = vsel %vm369, %v1870, 0
        %1874 = vmatprep.subr.mxu0 0.0
        %1875 = vmatpush1.msra.mxu0 %v350
        %1876 = vmatprep.subr.mxu0 0.0
        %1877 = vmatpush1.msra.mxu0 %v351
        %1878 = vmatprep.subr.mxu0 0.0
        %1879 = vmatpush1.msra.mxu0 %v352
        %1880 = vmatprep.subr.mxu0 0.0
        %1881 = vmatpush1.msra.mxu0 %v353
        %1882 = vmatprep.subr.mxu0 0.0
        %1883 = vmatpush1.msra.mxu0 0.0
        %1884 = vmatprep.subr.mxu0 0.0
        %1885 = vmatpush1.msra.mxu0 0.0
        %1886 = vmatprep.subr.mxu0 0.0
        %1887 = vmatpush1.msra.mxu0 0.0
        %1888 = vmatprep.subr.mxu0 0.0
        %1889 = vmatpush1.msra.mxu0 0.0
        %1890 = vmatprep.subr.mxu0 0.0
        %1891 = vmatpush1.msra.mxu0 0.0
        %1892 = vmatprep.subr.mxu0 0.0
        %1893 = vmatpush1.msra.mxu0 0.0
        %1894 = vmatprep.subr.mxu0 0.0
        %1895 = vmatpush1.msra.mxu0 0.0
        %1896 = vmatprep.subr.mxu0 0.0
        %1897 = vmatpush1.msra.mxu0 0.0
        %1898 = vmatprep.subr.mxu0 0.0
        %1899 = vmatpush1.msra.mxu0 0.0
        %1900 = vmatprep.subr.mxu0 0.0
        %1901 = vmatpush1.msra.mxu0 0.0
        %1902 = vmatprep.subr.mxu0 0.0
        %1903 = vmatpush1.msra.mxu0 0.0
        %1904 = vmatprep.subr.mxu0 0.0
        %1905 = vmatpush1.msra.mxu0 0.0
        %1906 = vmatprep.subr.mxu0 0.0
        %1907 = vmatpush1.msra.mxu0 0.0
        %1908 = vmatprep.subr.mxu0 0.0
        %1909 = vmatpush1.msra.mxu0 0.0
        %1910 = vmatprep.subr.mxu0 0.0
        %1911 = vmatpush1.msra.mxu0 0.0
        %1912 = vmatprep.subr.mxu0 0.0
        %1913 = vmatpush1.msra.mxu0 0.0
        %1914 = vmatprep.subr.mxu0 0.0
        %1915 = vmatpush1.msra.mxu0 0.0
        %1916 = vmatprep.subr.mxu0 0.0
        %1917 = vmatpush1.msra.mxu0 0.0
        %1918 = vmatprep.subr.mxu0 0.0
        %1919 = vmatpush1.msra.mxu0 0.0
        %1920 = vmatprep.subr.mxu0 0.0
        %1921 = vmatpush1.msra.mxu0 0.0
        %1922 = vmatprep.subr.mxu0 0.0
        %1923 = vmatpush1.msra.mxu0 0.0
        %1924 = vmatprep.subr.mxu0 0.0
        %1925 = vmatpush1.msra.mxu0 0.0
        %1926 = vmatprep.subr.mxu0 0.0
        %1927 = vmatpush1.msra.mxu0 0.0
        %1928 = vmatprep.subr.mxu0 0.0
        %1929 = vmatpush1.msra.mxu0 0.0
        %1930 = vmatprep.subr.mxu0 0.0
        %1931 = vmatpush1.msra.mxu0 0.0
        %1932 = vmatprep.subr.mxu0 0.0
        %1933 = vmatpush1.msra.mxu0 0.0
        %1934 = vmatprep.subr.mxu0 0.0
        %1935 = vmatpush1.msra.mxu0 0.0
        %1936 = vmatprep.subr.mxu0 0.0
        %1937 = vmatpush1.msra.mxu0 0.0
        %1938 = vmatprep.mubr.f32.mxu0 0.0
        %1939 = vmatmul.mubr.f32.gmra.mrb[0].mxu0 %v1872
        %v1940 = vpop.f32.mrb[0].mxu0
        %v1941 = vadd.f32 0.0, %v1940
        %v1942 = vpop.f32.mrb[0].mxu0
        %1943 = vdwg.mxu0
        %v1944 = vadd.f32 %v301, %v1941
        %v1945 = vmul.f32 %v1944, %v1944
        %v1946 = vsel %vm369, %v1945, 0.0
        %1947 = vadd.xlane.f32.xlu0 %v1946
        %v1948 = vpop.xlane.xlu0 %1947
        %v1949 = vrcp.pop 32.0
        %v1950 = vmul.f32 %v1948, %v1949
        %v1951 = vadd.f32 %v1950, 1.1920929e-07
        %v1952 = vrsqrt.pop %v1951
        %v1953 = vmul.f32 %v1944, %v1952
        %v1955 = vlaneseq
        %v1956 = vshrl.u32 %v1955, 7
        %v1957 = vsub.s32 0, %v1956
        %v1958 = vrot.slane %v366, %v1957
        %v1960 = vmul.f32 %v1953, %v1958
        %v1962 = vsel %vm369, %v1960, 0
        %1964 = vmatprep.subr.mxu0 0.0
        %1965 = vmatpush1.msra.mxu0 %v354
        %1966 = vmatprep.subr.mxu0 0.0
        %1967 = vmatpush1.msra.mxu0 %v355
        %1968 = vmatprep.subr.mxu0 0.0
        %1969 = vmatpush1.msra.mxu0 %v356
        %1970 = vmatprep.subr.mxu0 0.0
        %1971 = vmatpush1.msra.mxu0 %v357
        %1972 = vmatprep.subr.mxu0 0.0
        %1973 = vmatpush1.msra.mxu0 0.0
        %1974 = vmatprep.subr.mxu0 0.0
        %1975 = vmatpush1.msra.mxu0 0.0
        %1976 = vmatprep.subr.mxu0 0.0
        %1977 = vmatpush1.msra.mxu0 0.0
        %1978 = vmatprep.subr.mxu0 0.0
        %1979 = vmatpush1.msra.mxu0 0.0
        %1980 = vmatprep.subr.mxu0 0.0
        %1981 = vmatpush1.msra.mxu0 0.0
        %1982 = vmatprep.subr.mxu0 0.0
        %1983 = vmatpush1.msra.mxu0 0.0
        %1984 = vmatprep.subr.mxu0 0.0
        %1985 = vmatpush1.msra.mxu0 0.0
        %1986 = vmatprep.subr.mxu0 0.0
        %1987 = vmatpush1.msra.mxu0 0.0
        %1988 = vmatprep.subr.mxu0 0.0
        %1989 = vmatpush1.msra.mxu0 0.0
        %1990 = vmatprep.subr.mxu0 0.0
        %1991 = vmatpush1.msra.mxu0 0.0
        %1992 = vmatprep.subr.mxu0 0.0
        %1993 = vmatpush1.msra.mxu0 0.0
        %1994 = vmatprep.subr.mxu0 0.0
        %1995 = vmatpush1.msra.mxu0 0.0
        %1996 = vmatprep.subr.mxu0 0.0
        %1997 = vmatpush1.msra.mxu0 0.0
        %1998 = vmatprep.subr.mxu0 0.0
        %1999 = vmatpush1.msra.mxu0 0.0
        %2000 = vmatprep.subr.mxu0 0.0
        %2001 = vmatpush1.msra.mxu0 0.0
        %2002 = vmatprep.subr.mxu0 0.0
        %2003 = vmatpush1.msra.mxu0 0.0
        %2004 = vmatprep.subr.mxu0 0.0
        %2005 = vmatpush1.msra.mxu0 0.0
        %2006 = vmatprep.subr.mxu0 0.0
        %2007 = vmatpush1.msra.mxu0 0.0
        %2008 = vmatprep.subr.mxu0 0.0
        %2009 = vmatpush1.msra.mxu0 0.0
        %2010 = vmatprep.subr.mxu0 0.0
        %2011 = vmatpush1.msra.mxu0 0.0
        %2012 = vmatprep.subr.mxu0 0.0
        %2013 = vmatpush1.msra.mxu0 0.0
        %2014 = vmatprep.subr.mxu0 0.0
        %2015 = vmatpush1.msra.mxu0 0.0
        %2016 = vmatprep.subr.mxu0 0.0
        %2017 = vmatpush1.msra.mxu0 0.0
        %2018 = vmatprep.subr.mxu0 0.0
        %2019 = vmatpush1.msra.mxu0 0.0
        %2020 = vmatprep.subr.mxu0 0.0
        %2021 = vmatpush1.msra.mxu0 0.0
        %2022 = vmatprep.subr.mxu0 0.0
        %2023 = vmatpush1.msra.mxu0 0.0
        %2024 = vmatprep.subr.mxu0 0.0
        %2025 = vmatpush1.msra.mxu0 0.0
        %2026 = vmatprep.subr.mxu0 0.0
        %2027 = vmatpush1.msra.mxu0 0.0
        %2028 = vmatprep.mubr.f32.mxu0 0.0
        %2029 = vmatmul.mubr.f32.gmra.mrb[0].mxu0 %v1962
        %v2030 = vpop.f32.mrb[0].mxu0
        %v2031 = vadd.f32 0.0, %v2030
        %v2032 = vpop.f32.mrb[0].mxu0
        %2033 = vdwg.mxu0
        %v2034 = vxor.u32 %v2031, 2147483648
        %v2035 = vmul.f32 %v2034, 1.442695
        %v2036 = vpow.pop %v2035
        %v2037 = vadd.f32 %v2036, 1.0
        %v2038 = vrcp.pop %v2037
        %v2039 = vmul.f32 1.0, %v2038
        %v2040 = vmul.f32 %v2031, %v2039
        %2042 = vrot.lane.b32.xlu0 %v2040, 64
        %v2043 = vpop.permute.xlu0 %2042
        %v2045 = vmul.f32 %v2031, %v2043
        %v2047 = vlaneseq
        %v2048 = vshrl.u32 %v2047, 7
        %v2049 = vsub.s32 0, %v2048
        %v2050 = vrot.slane %v368, %v2049
        %vm2052 = vcmask 523264
        %v2054 = vsel %vm2052, %v2045, 0
        %2056 = vmatprep.subr.mxu0 0.0
        %2057 = vmatpush1.msra.mxu0 %v358
        %2058 = vmatprep.subr.mxu0 0.0
        %2059 = vmatpush1.msra.mxu0 %v359
        %2060 = vmatprep.subr.mxu0 0.0
        %2061 = vmatpush1.msra.mxu0 %v360
        %2062 = vmatprep.subr.mxu0 0.0
        %2063 = vmatpush1.msra.mxu0 %v361
        %2064 = vmatprep.subr.mxu0 0.0
        %2065 = vmatpush1.msra.mxu0 %v362
        %2066 = vmatprep.subr.mxu0 0.0
        %2067 = vmatpush1.msra.mxu0 %v363
        %2068 = vmatprep.subr.mxu0 0.0
        %2069 = vmatpush1.msra.mxu0 %v364
        %2070 = vmatprep.subr.mxu0 0.0
        %2071 = vmatpush1.msra.mxu0 %v365
        %2072 = vmatprep.subr.mxu0 0.0
        %2073 = vmatpush1.msra.mxu0 0.0
        %2074 = vmatprep.subr.mxu0 0.0
        %2075 = vmatpush1.msra.mxu0 0.0
        %2076 = vmatprep.subr.mxu0 0.0
        %2077 = vmatpush1.msra.mxu0 0.0
        %2078 = vmatprep.subr.mxu0 0.0
        %2079 = vmatpush1.msra.mxu0 0.0
        %2080 = vmatprep.subr.mxu0 0.0
        %2081 = vmatpush1.msra.mxu0 0.0
        %2082 = vmatprep.subr.mxu0 0.0
        %2083 = vmatpush1.msra.mxu0 0.0
        %2084 = vmatprep.subr.mxu0 0.0
        %2085 = vmatpush1.msra.mxu0 0.0
        %2086 = vmatprep.subr.mxu0 0.0
        %2087 = vmatpush1.msra.mxu0 0.0
        %2088 = vmatprep.subr.mxu0 0.0
        %2089 = vmatpush1.msra.mxu0 0.0
        %2090 = vmatprep.subr.mxu0 0.0
        %2091 = vmatpush1.msra.mxu0 0.0
        %2092 = vmatprep.subr.mxu0 0.0
        %2093 = vmatpush1.msra.mxu0 0.0
        %2094 = vmatprep.subr.mxu0 0.0
        %2095 = vmatpush1.msra.mxu0 0.0
        %2096 = vmatprep.subr.mxu0 0.0
        %2097 = vmatpush1.msra.mxu0 0.0
        %2098 = vmatprep.subr.mxu0 0.0
        %2099 = vmatpush1.msra.mxu0 0.0
        %2100 = vmatprep.subr.mxu0 0.0
        %2101 = vmatpush1.msra.mxu0 0.0
        %2102 = vmatprep.subr.mxu0 0.0
        %2103 = vmatpush1.msra.mxu0 0.0
        %2104 = vmatprep.subr.mxu0 0.0
        %2105 = vmatpush1.msra.mxu0 0.0
        %2106 = vmatprep.subr.mxu0 0.0
        %2107 = vmatpush1.msra.mxu0 0.0
        %2108 = vmatprep.subr.mxu0 0.0
        %2109 = vmatpush1.msra.mxu0 0.0
        %2110 = vmatprep.subr.mxu0 0.0
        %2111 = vmatpush1.msra.mxu0 0.0
        %2112 = vmatprep.subr.mxu0 0.0
        %2113 = vmatpush1.msra.mxu0 0.0
        %2114 = vmatprep.subr.mxu0 0.0
        %2115 = vmatpush1.msra.mxu0 0.0
        %2116 = vmatprep.subr.mxu0 0.0
        %2117 = vmatpush1.msra.mxu0 0.0
        %2118 = vmatprep.subr.mxu0 0.0
        %2119 = vmatpush1.msra.mxu0 0.0
        %2120 = vmatprep.mubr.f32.mxu0 0.0
        %2121 = vmatmul.mubr.f32.gmra.mrb[0].mxu0 %v2054
        %v2122 = vpop.f32.mrb[0].mxu0
        %v2123 = vadd.f32 %v2050, %v2122
        %v2124 = vpop.f32.mrb[0].mxu0
        %2125 = vdwg.mxu0
        %v2126 = vadd.f32 %v1960, %v2123
        %v2127 = vmul.f32 %v2126, %v2126
        %v2128 = vsel %vm369, %v2127, 0.0
        %2129 = vadd.xlane.f32.xlu0 %v2128
        %v2130 = vpop.xlane.xlu0 %2129
        %v2131 = vmul.f32 %v2130, %v1949
        %v2132 = vadd.f32 %v2131, 1.1920929e-07
        %v2133 = vrsqrt.pop %v2132
        %v2134 = vmul.f32 %v2126, %v2133
        %v2136 = vlaneseq
        %v2137 = vshrl.u32 %v2136, 7
        %v2138 = vsub.s32 0, %v2137
        %v2139 = vrot.slane %v367, %v2138
        %v2141 = vmul.f32 %v2134, %v2139
        %2142 = vst.msk [vmem:[%s296] sm:$0xff] %vm369, %v2141
        %s2143 = sand.u32 %s203, 1
        %s2144 = scalar_lea.sflag [#allocation3], %s2143
        %s2145 = sand.u32 %s203, 1
        %s2146 = smul.addr %s2145, 8
        %s2147 = scalar_lea.vmem [#allocation2], %s2146
        // Predicated region
        $region53: #{transformer_encoder_layer.1} parent=51 // pred_check
          %p2148 = pneg %p213
        $region54: #{transformer_encoder_layer.1} parent=51 // pred_check_branch
          %2150 = sbr.rel (%p2148) target = $region56
        $region55: #{transformer_encoder_layer.1} parent=51 // pred_region
          %s2152 = ssub.s32 128, 128
          %2153 = vsyncadd %s2144, %s2152
          %s2154 = smul.addr %s22, 128
          %s2155 = scalar_lea.hbm %s8, %s2154
          %s2157 = sshll.u32 %s2147, 4
          %s2158 = int_to_ptr.vmem [resolvable:$true] %s2157
          %2160 = dma.vmem_to_hbm [thread:$0]  %s2158, 128, %s2155, %s2144
        $region56: #{transformer_encoder_layer.1} parent=51 // pred_fallthru
          _
      $region52: #{transformer_encoder_layer.1} parent=5 // pred_fallthru
        _
      %p2161 = scmp.le.s32.totalorder 2, %s17
      // Predicated region
      $region57: #{transformer_encoder_layer.1} parent=5 // pred_check
        %p2162 = pneg %p2161
      $region58: #{transformer_encoder_layer.1} parent=5 // pred_check_branch
        %2164 = sbr.rel (%p2162) target = $region60
      $region59: #{transformer_encoder_layer.1} parent=5 // pred_region
        %s2165 = ssub.s32 %s17, 2
        // Predicated region
        $region61: #{transformer_encoder_layer.1} parent=59 // pred_check
          %p2166 = pneg %p219
        $region62: #{transformer_encoder_layer.1} parent=59 // pred_check_branch
          %2168 = sbr.rel (%p2166) target = $region64
        $region63: #{transformer_encoder_layer.1} parent=59 // pred_region
          %s2169 = sand.u32 %s204, 1
          %s2170 = scalar_lea.sflag [#allocation3], %s2169
          %s2171 = sand.u32 %s204, 1
          %s2172 = smul.addr %s2171, 8
          %s2173 = scalar_lea.vmem [#allocation2], %s2172
          %2174 = dma.done %s2170, 128
        $region64: #{transformer_encoder_layer.1} parent=59 // pred_fallthru
          _
      $region60: #{transformer_encoder_layer.1} parent=5 // pred_fallthru
        _
    $region6: #{transformer_encoder_layer.1} parent=1 // loop_footer
      %s21 = sadd.s32 1, %s17
    $region7: #{transformer_encoder_layer.1} parent=1 // loop_footer_branch
      %16 = sbr.rel target = $region3
    $region8: #{transformer_encoder_layer.1} parent=1 // loop_exit
      _
    %2175 = vsyncpa [#allocation3], 1
    %s2176 = scalar_lea.sflag [#allocation3], 1
    %2177 = vsyncpa %s2176, 1

</llo_original>
